<compile_context>
chip_gen: v7x
topology: tpu7x:2x2x1
jax: 0.10.0
libtpu: 0.0.40
codegen_flags: <defaults>
</compile_context>

<pallas_src>
import jax
import jax.numpy as jnp
from jax.experimental import pallas as pl
from jax.experimental.pallas import tpu as pltpu

EPS = 1e-5
# 64 MiB scoped VMEM: <= physical on every gen (v5e/v6e 128 MiB, v7x 64 MiB),
# well above the 16/32 MiB defaults so larger blocks stay double-buffered.
VMEM_LIMIT = 64 * 1024 * 1024


def _im2col_conv(pad_ref, w_ref, H, W):
    """3x3 'same' conv over a pre-padded VMEM buffer as ONE MXU contraction.

    pad_ref: VMEM (H+2, W+2, Cin) bf16 (zero halo already written)
    w_ref:   (9*Cin, Cout) bf16, (ky, kx, cin)-major rows
    Returns the f32 (H*W, Cout) conv result as a local value (no scratch RMW).
    """
    Cin = pad_ref.shape[2]
    pieces = []
    for ky in range(3):
        band = pad_ref[ky:ky + H]                     # (H, W+2, Cin)
        for kx in range(3):
            pieces.append(band[:, kx:kx + W, :])      # (H, W, Cin)
    # im2col patch: K = 9*Cin per output pixel -> one MXU matmul per image
    # instead of nine K=Cin matmuls (better systolic-array fill, 9x fewer
    # push/drain sequences).
    patch = jnp.concatenate(pieces, axis=2).reshape(H * W, 9 * Cin)
    return jnp.dot(patch, w_ref[...], preferred_element_type=jnp.float32)


def _conv1_bn_stats_kernel(x_ref, w_ref, y_ref, stat_ref, pad_ref):
    """conv1 (single im2col matmul) + fused per-image BN1 statistics.

    x_ref:    (H, W, Cin)       bf16  unpadded NHWC image
    w_ref:    (9*Cin, Cmid)     bf16
    y_ref:    (H, W, Cmid)      bf16  raw (pre-BN) conv1 output
    stat_ref: (2, Cmid)         f32   row 0 = sum, row 1 = sum of squares
    pad_ref:  VMEM (H+2, W+2, Cin) bf16 scratch (halo built in VMEM, not HBM)
    """
    H, W, Cin = x_ref.shape
    Hp, Wp = H + 2, W + 2

    # Zero ONLY the four 1-pixel halo strips, then write the interior once.
    pad_ref[0:1, :, :] = jnp.zeros((1, Wp, Cin), pad_ref.dtype)
    pad_ref[Hp - 1:Hp, :, :] = jnp.zeros((1, Wp, Cin), pad_ref.dtype)
    pad_ref[:, 0:1, :] = jnp.zeros((Hp, 1, Cin), pad_ref.dtype)
    pad_ref[:, Wp - 1:Wp, :] = jnp.zeros((Hp, 1, Cin), pad_ref.dtype)
    pad_ref[1:H + 1, 1:W + 1, :] = x_ref[...]

    acc = _im2col_conv(pad_ref, w_ref, H, W)          # (H*W, Cmid) f32, local
    Cmid = acc.shape[1]
    y_ref[...] = acc.reshape(H, W, Cmid).astype(y_ref.dtype)
    # Fused BN statistics (E[x], E[x^2]) from the f32 accumulator.
    stat_ref[0:1, :] = jnp.sum(acc, axis=0, keepdims=True)
    stat_ref[1:2, :] = jnp.sum(acc * acc, axis=0, keepdims=True)


def _bnrelu_conv2_bn_stats_kernel(y1_ref, scale_ref, shift_ref, w_ref,
                                  y2_ref, stat_ref, pad_ref):
    """BN1-affine + ReLU fused into conv2 (single im2col matmul) + BN2 stats.

    y1_ref:    (H, W, Cmid)      bf16  raw conv1 output
    scale_ref: (1, Cmid)         f32   gamma1 * rsqrt(var1 + eps)
    shift_ref: (1, Cmid)         f32   beta1 - mean1 * scale1
    w_ref:     (9*Cmid, Cout)    bf16
    y2_ref:    (H, W, Cout)      bf16  raw (pre-BN) conv2 output
    stat_ref:  (2, Cout)         f32
    pad_ref:   VMEM (H+2, W+2, Cmid) bf16
    """
    H, W, Cmid = y1_ref.shape
    Hp, Wp = H + 2, W + 2

    z = jnp.maximum(
        y1_ref[...].astype(jnp.float32) * scale_ref[...] + shift_ref[...], 0.0)

    pad_ref[0:1, :, :] = jnp.zeros((1, Wp, Cmid), pad_ref.dtype)
    pad_ref[Hp - 1:Hp, :, :] = jnp.zeros((1, Wp, Cmid), pad_ref.dtype)
    pad_ref[:, 0:1, :] = jnp.zeros((Hp, 1, Cmid), pad_ref.dtype)
    pad_ref[:, Wp - 1:Wp, :] = jnp.zeros((Hp, 1, Cmid), pad_ref.dtype)
    pad_ref[1:H + 1, 1:W + 1, :] = z.astype(pad_ref.dtype)

    acc = _im2col_conv(pad_ref, w_ref, H, W)          # (H*W, Cout) f32, local
    Cout = acc.shape[1]
    y2_ref[...] = acc.reshape(H, W, Cout).astype(y2_ref.dtype)
    stat_ref[0:1, :] = jnp.sum(acc, axis=0, keepdims=True)
    stat_ref[1:2, :] = jnp.sum(acc * acc, axis=0, keepdims=True)


def _bn_relu_to_nchw_kernel(y_ref, scale_ref, shift_ref, o_ref):
    """BN2-affine + ReLU + NHWC->NCHW fold on one row tile.

    y_ref:     (TH, W, Cout) bf16
    scale_ref: (1, Cout)     f32
    shift_ref: (1, Cout)     f32
    o_ref:     (Cout, TH*W)  f32  lane-dense channel-major (NCHW) block
    """
    TH, W, C = y_ref.shape
    z = jnp.maximum(
        y_ref[...].reshape(TH * W, C).astype(jnp.float32) * scale_ref[...]
        + shift_ref[...], 0.0)                        # (TH*W, C)
    # Realize the (TH*W, C) -> (C, TH*W) transpose on the otherwise-idle MXU
    # as eye(C) contracted against z's minor dim (A @ B^T form — robust
    # lowering, no relayout of the big operand).
    # TODO(synk): for very wide C an XLU jnp.transpose may be cheaper.
    row = jax.lax.broadcasted_iota(jnp.int32, (C, C), 0)
    col = jax.lax.broadcasted_iota(jnp.int32, (C, C), 1)
    eye = (row == col).astype(jnp.float32)
    o_ref[...] = jax.lax.dot_general(
        eye, z, (((1,), (1,)), ((), ())), preferred_element_type=jnp.float32)


def _pick_row_tile(H, W, bytes_per_row, target_bytes=2 << 20):
    """Largest divisor of H whose tile is lane-aligned (th*W % 128 == 0, or
    th == H) and <= target_bytes; falls back to the smallest aligned divisor
    (never the whole batch)."""
    divisors = [t for t in range(1, H + 1) if H % t == 0]
    aligned = [t for t in divisors if t == H or (t * W) % 128 == 0]
    fitting = [t for t in aligned if t * bytes_per_row <= target_bytes]
    return max(fitting) if fitting else min(aligned)


def double_conv_pallas(x_nchw, w1, g1, b1, w2, g2, b2):
    """x_nchw: (N, Cin, H, W) f32; w1 (3,3,Cin,Cmid), w2 (3,3,Cmid,Cout) HWIO.
    g*/b*: BatchNorm affine params (reshapeable to (C,)).
    Returns (N, Cout, H, W) f32 — training-mode BatchNorm forward semantics."""
    N, Cin, H, W = x_nchw.shape
    Cmid = w1.shape[3]
    Cout = w2.shape[3]
    count = N * H * W

    cp_img = pltpu.CompilerParams(dimension_semantics=("parallel",),
                                  vmem_limit_bytes=VMEM_LIMIT)

    # NCHW -> NHWC + bf16 cast in one fused XLA pass. No HBM-side spatial
    # padding any more — the halo is built in VMEM inside each conv pass.
    # TODO(synk): fold this layout transpose into pass 1 (in-kernel CHW->HWC
    # relayout) to remove the remaining input round trip.
    x_nhwc = jnp.transpose(x_nchw, (0, 2, 3, 1)).astype(jnp.bfloat16)
    w1b = w1.astype(jnp.bfloat16).reshape(9 * Cin, Cmid)   # (ky,kx,cin)-major
    w2b = w2.astype(jnp.bfloat16).reshape(9 * Cmid, Cout)

    # ---- pass 1: conv1 (one im2col matmul) + fused BN1 stats (grid over N) --
    # TODO(synk): halo'd row tiling (grid=(N, H//TH)) for large feature maps so
    # the per-step working set stays inside v7x's 64 MiB VMEM and both of its
    # TensorCores get work at small batch; single-buffer the constant-index
    # weight spec (pipeline_mode=pl.Buffered(1)); pad channels toward 128/256
    # multiples for lane-dense stores at realistic UNet widths.
    y1, stat1 = pl.pallas_call(
        _conv1_bn_stats_kernel,
        out_shape=(jax.ShapeDtypeStruct((N, H, W, Cmid), jnp.bfloat16),
                   jax.ShapeDtypeStruct((N, 2, Cmid), jnp.float32)),
        grid=(N,),
        in_specs=[
            pl.BlockSpec((None, H, W, Cin), lambda n: (n, 0, 0, 0)),
            pl.BlockSpec((9 * Cin, Cmid), lambda n: (0, 0)),
        ],
        out_specs=(
            pl.BlockSpec((None, H, W, Cmid), lambda n: (n, 0, 0, 0)),
            pl.BlockSpec((None, 2, Cmid), lambda n: (n, 0, 0)),
        ),
        scratch_shapes=[pltpu.VMEM((H + 2, W + 2, Cin), jnp.bfloat16)],
        compiler_params=cp_img,
    )(x_nhwc, w1b)

    # Tiny cross-image reduction -> folded BN1 scale/shift.
    # TODO(synk): E[x^2]-E[x]^2 in f32 is cancellation-prone at large N*H*W;
    # switch to a shifted / Welford-style reduction for big UNet feature maps.
    mean1 = jnp.sum(stat1[:, 0, :], axis=0) / count
    var1 = jnp.sum(stat1[:, 1, :], axis=0) / count - mean1 * mean1
    scale1 = g1.reshape(-1) * jax.lax.rsqrt(var1 + EPS)
    shift1 = b1.reshape(-1) - mean1 * scale1

    # ---- pass 2: BN1+ReLU fused into conv2 + fused BN2 stats (grid over N) --
    y2, stat2 = pl.pallas_call(
        _bnrelu_conv2_bn_stats_kernel,
        out_shape=(jax.ShapeDtypeStruct((N, H, W, Cout), jnp.bfloat16),
                   jax.ShapeDtypeStruct((N, 2, Cout), jnp.float32)),
        grid=(N,),
        in_specs=[
            pl.BlockSpec((None, H, W, Cmid), lambda n: (n, 0, 0, 0)),
            pl.BlockSpec((1, Cmid), lambda n: (0, 0)),
            pl.BlockSpec((1, Cmid), lambda n: (0, 0)),
            pl.BlockSpec((9 * Cmid, Cout), lambda n: (0, 0)),
        ],
        out_specs=(
            pl.BlockSpec((None, H, W, Cout), lambda n: (n, 0, 0, 0)),
            pl.BlockSpec((None, 2, Cout), lambda n: (n, 0, 0)),
        ),
        scratch_shapes=[pltpu.VMEM((H + 2, W + 2, Cmid), jnp.bfloat16)],
        compiler_params=cp_img,
    )(y1,
      scale1.reshape(1, Cmid).astype(jnp.float32),
      shift1.reshape(1, Cmid).astype(jnp.float32),
      w2b)

    mean2 = jnp.sum(stat2[:, 0, :], axis=0) / count
    var2 = jnp.sum(stat2[:, 1, :], axis=0) / count - mean2 * mean2
    scale2 = g2.reshape(-1) * jax.lax.rsqrt(var2 + EPS)
    shift2 = b2.reshape(-1) - mean2 * scale2

    # ---- pass 3: BN2-affine + ReLU + NCHW fold, row-tiled (grid N x H/TH) ---
    th = _pick_row_tile(H, W, W * Cout * 6)   # ~bf16 in + f32 out per row
    cp_rows = pltpu.CompilerParams(dimension_semantics=("parallel", "parallel"),
                                   vmem_limit_bytes=VMEM_LIMIT)
    out_flat = pl.pallas_call(
        _bn_relu_to_nchw_kernel,
        out_shape=jax.ShapeDtypeStruct((N, Cout, H * W), jnp.float32),
        grid=(N, H // th),
        in_specs=[
            pl.BlockSpec((None, th, W, Cout), lambda n, h: (n, h, 0, 0)),
            pl.BlockSpec((1, Cout), lambda n, h: (0, 0)),
            pl.BlockSpec((1, Cout), lambda n, h: (0, 0)),
        ],
        out_specs=pl.BlockSpec((None, Cout, th * W), lambda n, h: (n, 0, h)),
        compiler_params=cp_rows,
    )(y2,
      scale2.reshape(1, Cout).astype(jnp.float32),
      shift2.reshape(1, Cout).astype(jnp.float32))

    # Row-major (N, Cout, H*W) -> (N, Cout, H, W): metadata-only reshape.
    return out_flat.reshape(N, Cout, H, W)


def double_conv_ref(x_nchw, w1, g1, b1, w2, g2, b2):
    """Pure-JAX f32 reference matching PyTorch training-mode forward."""
    def conv(x, w):
        return jax.lax.conv_general_dilated(
            x, w, window_strides=(1, 1), padding="SAME",
            dimension_numbers=("NCHW", "HWIO", "NCHW"))

    def bn_relu(x, g, b):
        mean = jnp.mean(x, axis=(0, 2, 3), keepdims=True)
        var = jnp.mean((x - mean) ** 2, axis=(0, 2, 3), keepdims=True)
        y = (x - mean) * (g.reshape(1, -1, 1, 1) * jax.lax.rsqrt(var + EPS)) \
            + b.reshape(1, -1, 1, 1)
        return jnp.maximum(y, 0.0)

    y = bn_relu(conv(x_nchw, w1), g1, b1)
    y = bn_relu(conv(y, w2), g2, b2)
    return y


if __name__ == "__main__":
    N, Cin, Cout, H, W = 2, 4, 8, 16, 16

    key = jax.random.PRNGKey(0)
    k_x, k_w1, k_w2, k_g1, k_b1, k_g2, k_b2 = jax.random.split(key, 7)

    x = jax.random.normal(k_x, (N, Cin, H, W), jnp.float32)

    # Conv weights in HWIO; kaiming-ish deterministic init.
    w1 = jax.random.normal(k_w1, (3, 3, Cin, Cout), jnp.float32) \
        * (2.0 / (9 * Cin)) ** 0.5
    w2 = jax.random.normal(k_w2, (3, 3, Cout, Cout), jnp.float32) \
        * (2.0 / (9 * Cout)) ** 0.5

    # BatchNorm affine params (non-trivial so the path is exercised).
    g1 = 1.0 + 0.1 * jax.random.normal(k_g1, (1, Cout), jnp.float32)
    b1 = 0.1 * jax.random.normal(k_b1, (1, Cout), jnp.float32)
    g2 = 1.0 + 0.1 * jax.random.normal(k_g2, (1, Cout), jnp.float32)
    b2 = 0.1 * jax.random.normal(k_b2, (1, Cout), jnp.float32)

    out = double_conv_pallas(x, w1, g1, b1, w2, g2, b2)
    out = jax.block_until_ready(out)

    ref = double_conv_ref(x, w1, g1, b1, w2, g2, b2)
    assert out.shape == (N, Cout, H, W)
    # bf16 MXU inputs / bf16 intermediates (f32 accumulation) -> bf16 tolerance.
    assert jnp.allclose(out, ref, atol=5e-2, rtol=5e-2), \
        f"max err {jnp.max(jnp.abs(out - ref))}"

    print("KERNEL_OK")
</pallas_src>

<mosaic_0001>
module attributes {stable_mosaic.version = 11 : i64} {
  func.func @_conv1_bn_stats_kernel(%arg0: i32, %arg1: memref<1x16x16x4xbf16, #tpu.memory_space<vmem>>, %arg2: memref<36x8xbf16, #tpu.memory_space<vmem>>, %arg3: memref<1x16x16x8xbf16, #tpu.memory_space<vmem>>, %arg4: memref<1x2x8xf32, #tpu.memory_space<vmem>>, %arg5: memref<18x18x4xbf16, #tpu.memory_space<vmem>>) attributes {dimension_semantics = [#tpu.dimension_semantics<parallel>], iteration_bounds = array<i64: 2>, scalar_prefetch = 0 : i64, scratch_operands = 1 : i64, tpu.core_type = #tpu.core_type<tc>, window_params = [{transform_indices = @transform_0, window_bounds = array<i64: 1, 16, 16, 4>}, {pipeline_mode = #tpu.pipeline_mode<synchronous>, transform_indices = @transform_1, window_bounds = array<i64: 36, 8>}, {transform_indices = @transform_2, window_bounds = array<i64: 1, 16, 16, 8>}, {transform_indices = @transform_3, window_bounds = array<i64: 1, 2, 8>}]} {
    %cst = arith.constant 0.000000e+00 : bf16
    %0 = vector.broadcast %cst : bf16 to vector<1x18x4xbf16>
    %c0 = arith.constant 0 : index
    %c0_0 = arith.constant 0 : index
    %c0_1 = arith.constant 0 : index
    %1 = vector.load %arg5[%c0, %c0_0, %c0_1] : memref<18x18x4xbf16, #tpu.memory_space<vmem>>, vector<1x18x4xbf16>
    tpu.vector_store %arg5[%c0, %c0_0, %c0_1], %0 {strides = array<i32>} : memref<18x18x4xbf16, #tpu.memory_space<vmem>>, vector<1x18x4xbf16>,
    %cst_2 = arith.constant 0.000000e+00 : bf16
    %2 = vector.broadcast %cst_2 : bf16 to vector<1x18x4xbf16>
    %c17 = arith.constant 17 : index
    %c0_3 = arith.constant 0 : index
    %c0_4 = arith.constant 0 : index
    %3 = vector.load %arg5[%c17, %c0_3, %c0_4] : memref<18x18x4xbf16, #tpu.memory_space<vmem>>, vector<1x18x4xbf16>
    tpu.vector_store %arg5[%c17, %c0_3, %c0_4], %2 {strides = array<i32>} : memref<18x18x4xbf16, #tpu.memory_space<vmem>>, vector<1x18x4xbf16>,
    %cst_5 = arith.constant 0.000000e+00 : bf16
    %4 = vector.broadcast %cst_5 : bf16 to vector<18x1x4xbf16>
    %c0_6 = arith.constant 0 : index
    %c0_7 = arith.constant 0 : index
    %c0_8 = arith.constant 0 : index
    %5 = vector.load %arg5[%c0_6, %c0_7, %c0_8] : memref<18x18x4xbf16, #tpu.memory_space<vmem>>, vector<18x1x4xbf16>
    tpu.vector_store %arg5[%c0_6, %c0_7, %c0_8], %4 {strides = array<i32>} : memref<18x18x4xbf16, #tpu.memory_space<vmem>>, vector<18x1x4xbf16>,
    %cst_9 = arith.constant 0.000000e+00 : bf16
    %6 = vector.broadcast %cst_9 : bf16 to vector<18x1x4xbf16>
    %c0_10 = arith.constant 0 : index
    %c17_11 = arith.constant 17 : index
    %c0_12 = arith.constant 0 : index
    %7 = vector.load %arg5[%c0_10, %c17_11, %c0_12] : memref<18x18x4xbf16, #tpu.memory_space<vmem>>, vector<18x1x4xbf16>
    tpu.vector_store %arg5[%c0_10, %c17_11, %c0_12], %6 {strides = array<i32>} : memref<18x18x4xbf16, #tpu.memory_space<vmem>>, vector<18x1x4xbf16>,
    %c0_13 = arith.constant 0 : index
    %c0_14 = arith.constant 0 : index
    %c0_15 = arith.constant 0 : index
    %c0_16 = arith.constant 0 : index
    %8 = vector.load %arg1[%c0_13, %c0_14, %c0_15, %c0_16] : memref<1x16x16x4xbf16, #tpu.memory_space<vmem>>, vector<1x16x16x4xbf16>
    %9 = vector.shape_cast %8 : vector<1x16x16x4xbf16> to vector<16x16x4xbf16>
    %c1 = arith.constant 1 : index
    %c1_17 = arith.constant 1 : index
    %c0_18 = arith.constant 0 : index
    %10 = vector.load %arg5[%c1, %c1_17, %c0_18] : memref<18x18x4xbf16, #tpu.memory_space<vmem>>, vector<16x16x4xbf16>
    tpu.vector_store %arg5[%c1, %c1_17, %c0_18], %9 {strides = array<i32>} : memref<18x18x4xbf16, #tpu.memory_space<vmem>>, vector<16x16x4xbf16>,
    %c0_19 = arith.constant 0 : index
    %c0_20 = arith.constant 0 : index
    %c0_21 = arith.constant 0 : index
    %11 = vector.load %arg5[%c0_19, %c0_20, %c0_21] : memref<18x18x4xbf16, #tpu.memory_space<vmem>>, vector<16x18x4xbf16>
    %12 = vector.extract_strided_slice %11 {offsets = [0, 0, 0], sizes = [16, 16, 4], strides = [1, 1, 1]} : vector<16x18x4xbf16> to vector<16x16x4xbf16>
    %13 = vector.extract_strided_slice %11 {offsets = [0, 1, 0], sizes = [16, 16, 4], strides = [1, 1, 1]} : vector<16x18x4xbf16> to vector<16x16x4xbf16>
    %14 = vector.extract_strided_slice %11 {offsets = [0, 2, 0], sizes = [16, 16, 4], strides = [1, 1, 1]} : vector<16x18x4xbf16> to vector<16x16x4xbf16>
    %c1_22 = arith.constant 1 : index
    %c0_23 = arith.constant 0 : index
    %c0_24 = arith.constant 0 : index
    %15 = vector.load %arg5[%c1_22, %c0_23, %c0_24] : memref<18x18x4xbf16, #tpu.memory_space<vmem>>, vector<16x18x4xbf16>
    %16 = vector.extract_strided_slice %15 {offsets = [0, 0, 0], sizes = [16, 16, 4], strides = [1, 1, 1]} : vector<16x18x4xbf16> to vector<16x16x4xbf16>
    %17 = vector.extract_strided_slice %15 {offsets = [0, 1, 0], sizes = [16, 16, 4], strides = [1, 1, 1]} : vector<16x18x4xbf16> to vector<16x16x4xbf16>
    %18 = vector.extract_strided_slice %15 {offsets = [0, 2, 0], sizes = [16, 16, 4], strides = [1, 1, 1]} : vector<16x18x4xbf16> to vector<16x16x4xbf16>
    %c2 = arith.constant 2 : index
    %c0_25 = arith.constant 0 : index
    %c0_26 = arith.constant 0 : index
    %19 = vector.load %arg5[%c2, %c0_25, %c0_26] : memref<18x18x4xbf16, #tpu.memory_space<vmem>>, vector<16x18x4xbf16>
    %20 = vector.extract_strided_slice %19 {offsets = [0, 0, 0], sizes = [16, 16, 4], strides = [1, 1, 1]} : vector<16x18x4xbf16> to vector<16x16x4xbf16>
    %21 = vector.extract_strided_slice %19 {offsets = [0, 1, 0], sizes = [16, 16, 4], strides = [1, 1, 1]} : vector<16x18x4xbf16> to vector<16x16x4xbf16>
    %22 = vector.extract_strided_slice %19 {offsets = [0, 2, 0], sizes = [16, 16, 4], strides = [1, 1, 1]} : vector<16x18x4xbf16> to vector<16x16x4xbf16>
    %23 = tpu.concatenate %12, %13, %14, %16, %17, %18, %20, %21, %22 in 2 : vector<16x16x4xbf16>, vector<16x16x4xbf16>, vector<16x16x4xbf16>, vector<16x16x4xbf16>, vector<16x16x4xbf16>, vector<16x16x4xbf16>, vector<16x16x4xbf16>, vector<16x16x4xbf16>, vector<16x16x4xbf16> -> vector<16x16x36xbf16>
    %24 = vector.shape_cast %23 : vector<16x16x36xbf16> to vector<256x36xbf16>
    %c0_27 = arith.constant 0 : index
    %c0_28 = arith.constant 0 : index
    %25 = vector.load %arg2[%c0_27, %c0_28] : memref<36x8xbf16, #tpu.memory_space<vmem>>, vector<36x8xbf16>
    %cst_29 = arith.constant dense<0.000000e+00> : vector<256x8xf32>
    %26 = tpu.matmul %24, %25, %cst_29 {dimension_numbers = #tpu.dot_dimension_numbers<[1], [0], [0], [1], [0, 0, 1, 1], [], []>} : vector<256x36xbf16>, vector<36x8xbf16>, vector<256x8xf32> -> vector<256x8xf32>
    %27 = vector.shape_cast %26 : vector<256x8xf32> to vector<16x16x8xf32>
    %28 = arith.truncf %27 : vector<16x16x8xf32> to vector<16x16x8xbf16>
    %c0_30 = arith.constant 0 : index
    %c0_31 = arith.constant 0 : index
    %c0_32 = arith.constant 0 : index
    %c0_33 = arith.constant 0 : index
    %29 = vector.load %arg3[%c0_30, %c0_31, %c0_32, %c0_33] : memref<1x16x16x8xbf16, #tpu.memory_space<vmem>>, vector<1x16x16x8xbf16>
    %30 = vector.shape_cast %29 : vector<1x16x16x8xbf16> to vector<16x16x8xbf16>
    %31 = vector.shape_cast %28 : vector<16x16x8xbf16> to vector<1x16x16x8xbf16>
    tpu.vector_store %arg3[%c0_30, %c0_31, %c0_32, %c0_33], %31 {strides = array<i32>} : memref<1x16x16x8xbf16, #tpu.memory_space<vmem>>, vector<1x16x16x8xbf16>,
    %cst_34 = arith.constant dense<0.000000e+00> : vector<8xf32>
    %32 = vector.multi_reduction <add>, %26, %cst_34 [0] : vector<256x8xf32> to vector<8xf32>
    %33 = vector.shape_cast %32 : vector<8xf32> to vector<1x8xf32>
    %c0_35 = arith.constant 0 : index
    %c0_36 = arith.constant 0 : index
    %c0_37 = arith.constant 0 : index
    %34 = vector.load %arg4[%c0_35, %c0_36, %c0_37] : memref<1x2x8xf32, #tpu.memory_space<vmem>>, vector<1x1x8xf32>
    %35 = vector.shape_cast %34 : vector<1x1x8xf32> to vector<1x8xf32>
    %36 = vector.shape_cast %33 : vector<1x8xf32> to vector<1x1x8xf32>
    tpu.vector_store %arg4[%c0_35, %c0_36, %c0_37], %36 {strides = array<i32>} : memref<1x2x8xf32, #tpu.memory_space<vmem>>, vector<1x1x8xf32>,
    %37 = arith.mulf %26, %26 : vector<256x8xf32>
    %cst_38 = arith.constant dense<0.000000e+00> : vector<8xf32>
    %38 = vector.multi_reduction <add>, %37, %cst_38 [0] : vector<256x8xf32> to vector<8xf32>
    %39 = vector.shape_cast %38 : vector<8xf32> to vector<1x8xf32>
    %c0_39 = arith.constant 0 : index
    %c1_40 = arith.constant 1 : index
    %c0_41 = arith.constant 0 : index
    %40 = vector.load %arg4[%c0_39, %c1_40, %c0_41] : memref<1x2x8xf32, #tpu.memory_space<vmem>>, vector<1x1x8xf32>
    %41 = vector.shape_cast %40 : vector<1x1x8xf32> to vector<1x8xf32>
    %42 = vector.shape_cast %39 : vector<1x8xf32> to vector<1x1x8xf32>
    tpu.vector_store %arg4[%c0_39, %c1_40, %c0_41], %42 {strides = array<i32>} : memref<1x2x8xf32, #tpu.memory_space<vmem>>, vector<1x1x8xf32>,
    return
  }
  func.func @transform_0(%arg0: i32) -> (i32, i32, i32, i32) {
    %c0_i32 = arith.constant 0 : i32
    %c0_i32_0 = arith.constant 0 : i32
    %c0_i32_1 = arith.constant 0 : i32
    %c0_i32_2 = arith.constant 0 : i32
    return %arg0, %c0_i32, %c0_i32_0, %c0_i32_1 : i32, i32, i32, i32
  }
  func.func @transform_1(%arg0: i32) -> (i32, i32) {
    %c0_i32 = arith.constant 0 : i32
    %c0_i32_0 = arith.constant 0 : i32
    %c0_i32_1 = arith.constant 0 : i32
    return %c0_i32, %c0_i32_0 : i32, i32
  }
  func.func @transform_2(%arg0: i32) -> (i32, i32, i32, i32) {
    %c0_i32 = arith.constant 0 : i32
    %c0_i32_0 = arith.constant 0 : i32
    %c0_i32_1 = arith.constant 0 : i32
    %c0_i32_2 = arith.constant 0 : i32
    return %arg0, %c0_i32, %c0_i32_0, %c0_i32_1 : i32, i32, i32, i32
  }
  func.func @transform_3(%arg0: i32) -> (i32, i32, i32) {
    %c0_i32 = arith.constant 0 : i32
    %c0_i32_0 = arith.constant 0 : i32
    %c0_i32_1 = arith.constant 0 : i32
    return %arg0, %c0_i32, %c0_i32_0 : i32, i32, i32
  }
}

</mosaic_0001>

<llo_original>
// kernel: tpu_custom_call.1
$region0: #{tpu_custom_call.1}
  #allocation0 [shape = 'u32[]', space=smem, size = 0x4, offset = 0x4, fixed_abs, tag = 'smem constant byte address 0x4 - core index']
  #allocation1 [shape = 'u32[144,128]{1,0:T(1,128)}', space=vmem, size = 0x12000, scoped, tag = 'internal scratch']
  #allocation2 [shape = 'bf16[18,18,4]{2,1,0:T(8,128)(2,1)}', space=vmem, size = 0x1b000, scoped, tag = 'scratch operand']
  %s0 = inlined_call_operand.hbm [shape: bf16[2,16,16,4], index: 0, kind: input, shape index: {}]
  %s1 = inlined_call_operand.hbm [shape: bf16[36,8], index: 1, kind: input, shape index: {}]
  %s2 = inlined_call_operand.hbm [shape: bf16[2,16,16,8], index: 2, kind: output, shape index: {0}]
  %s3 = inlined_call_operand.hbm [shape: f32[2,2,8], index: 3, kind: output, shape index: {1}]
  %4 = xla_tuple %s2, %s3
  %s5 = sld [smem:[#allocation0]]
  $region57: #{tpu_custom_call.1} parent=0
    _
  %s7 = ssub.s32 1, %s5
  %s8 = scalar_select 0, %s7, %s5
  $region1: #{tpu_custom_call.1} parent=0
    #allocation3 [shape = 'u8[131072]{0}', space=vmem, size = 0x20000, scoped, tag = 'input window, operand 0']
    #allocation4 [shape = 's32[2]{0}', space=sflag, size = 0x8, scoped, tag = 'scoped memory for tpu_custom_call.1']
    #allocation5 [shape = 's32[2]{0}', space=sflag, size = 0x8, scoped, tag = 'scoped memory for tpu_custom_call.1']
    #allocation6 [shape = 'u8[10240]{0}', space=vmem, size = 0x2800, scoped, tag = 'input window, operand 1, single buffered']
    #allocation7 [shape = 's32[1]{0}', space=sflag, size = 0x4, scoped, tag = 'scoped memory for tpu_custom_call.1']
    #allocation8 [shape = 'u8[131072]{0}', space=vmem, size = 0x20000, scoped, tag = 'output window, operand 0']
    #allocation9 [shape = 'u8[2048]{0}', space=vmem, size = 0x800, scoped, tag = 'output window, operand 1']
    #allocation10 [shape = 's32[2]{0}', space=sflag, size = 0x8, scoped, tag = 'scoped memory for tpu_custom_call.1']
    %9 = vsyncpa [#allocation4], 0
    %s10 = scalar_lea.sflag [#allocation4], 1
    %11 = vsyncpa %s10, 0
    %12 = vsyncpa [#allocation7], 0
    %13 = vsyncpa [#allocation5], 0
    %s14 = scalar_lea.sflag [#allocation5], 1
    %15 = vsyncpa %s14, 0
    %16 = vsyncpa [#allocation10], 0
    %s17 = scalar_lea.sflag [#allocation10], 1
    %18 = vsyncpa %s17, 0
    loop: start=0, step=1, limit=4
    $region2: #{tpu_custom_call.1} parent=1 // loop_pre_header
      _
    $region3: #{tpu_custom_call.1} parent=1 // loop_header
      %s20 = sphi 0, %s24
      %p21 = scmp.ge.s32.totalorder %s20, 4
      %s30 = sphi 0, %s32
      %s33 = sphi 0, %s30
      %s34 = sphi 0, %s33
      %s50 = sphi 0, %s34
      %s54 = sphi 0, %s54
      %s56 = sphi 0, %s54
      %s57 = sphi 0, %s56
      %s71 = sphi 0, %s57
      %s77 = sphi 0, %s79
      %s80 = sphi 0, %s77
      %s81 = sphi 0, %s80
      %s97 = sphi 0, %s81
      %s103 = sphi 0, %s105
      %s106 = sphi 0, %s103
      %s107 = sphi 0, %s106
      %s123 = sphi 0, %s107
    $region4: #{tpu_custom_call.1} parent=1 // loop_header_branch
      %23 = sbr.rel (%p21) target = $region8
    $region5: #{tpu_custom_call.1} parent=1 // loop_body
      %s25 = ssub.s32 %s20, 1
      %s26 = ssub.s32 %s20, 2
      %s27 = sadd.s32 %s20, 1
      %s28 = ssub.s32 %s20, %s27
      %p29 = scmp.eq.s32.totalorder %s28, 0
      %s31 = sadd.s32 %s30, 1
      %s32 = scalar_select %p29, %s30, %s31
      %p35 = pneg %p29
      %p36 = scmp.eq.s32.totalorder %s20, 1
      %p37 = por %p35, %p36
      %p38 = scmp.ne.s32.totalorder %s30, %s33
      %p39 = scmp.eq.s32.totalorder %s20, 0
      %p40 = por %p38, %p39
      %p41 = scmp.ne.s32.totalorder %s30, %s33
      %p42 = scmp.eq.s32.totalorder %s25, 1
      %p43 = por %p41, %p42
      %p44 = scmp.ne.s32.totalorder %s33, %s34
      %p45 = scmp.eq.s32.totalorder %s25, 0
      %p46 = por %p44, %p45
      %p47 = scmp.ne.s32.totalorder %s33, %s34
      %p48 = scmp.eq.s32.totalorder %s26, 1
      %p49 = por %p47, %p48
      %p51 = scmp.ne.s32.totalorder %s34, %s50
      %p52 = scmp.eq.s32.totalorder %s26, 0
      %p53 = por %p51, %p52
      %s55 = sadd.s32 %s54, 1
      %p58 = scmp.eq.s32.totalorder %s20, 1
      %p59 = scmp.ne.s32.totalorder %s54, %s56
      %p60 = scmp.eq.s32.totalorder %s20, 0
      %p61 = por %p59, %p60
      %p62 = scmp.ne.s32.totalorder %s54, %s56
      %p63 = scmp.eq.s32.totalorder %s25, 1
      %p64 = por %p62, %p63
      %p65 = scmp.ne.s32.totalorder %s56, %s57
      %p66 = scmp.eq.s32.totalorder %s25, 0
      %p67 = por %p65, %p66
      %p68 = scmp.ne.s32.totalorder %s56, %s57
      %p69 = scmp.eq.s32.totalorder %s26, 1
      %p70 = por %p68, %p69
      %p72 = scmp.ne.s32.totalorder %s57, %s71
      %p73 = scmp.eq.s32.totalorder %s26, 0
      %p74 = por %p72, %p73
      %s75 = ssub.s32 %s20, %s27
      %p76 = scmp.eq.s32.totalorder %s75, 0
      %s78 = sadd.s32 %s77, 1
      %s79 = scalar_select %p76, %s77, %s78
      %p82 = pneg %p76
      %p83 = scmp.eq.s32.totalorder %s20, 1
      %p84 = por %p82, %p83
      %p85 = scmp.ne.s32.totalorder %s77, %s80
      %p86 = scmp.eq.s32.totalorder %s20, 0
      %p87 = por %p85, %p86
      %p88 = scmp.ne.s32.totalorder %s77, %s80
      %p89 = scmp.eq.s32.totalorder %s25, 1
      %p90 = por %p88, %p89
      %p91 = scmp.ne.s32.totalorder %s80, %s81
      %p92 = scmp.eq.s32.totalorder %s25, 0
      %p93 = por %p91, %p92
      %p94 = scmp.ne.s32.totalorder %s80, %s81
      %p95 = scmp.eq.s32.totalorder %s26, 1
      %p96 = por %p94, %p95
      %p98 = scmp.ne.s32.totalorder %s81, %s97
      %p99 = scmp.eq.s32.totalorder %s26, 0
      %p100 = por %p98, %p99
      %s101 = ssub.s32 %s20, %s27
      %p102 = scmp.eq.s32.totalorder %s101, 0
      %s104 = sadd.s32 %s103, 1
      %s105 = scalar_select %p102, %s103, %s104
      %p108 = pneg %p102
      %p109 = scmp.eq.s32.totalorder %s20, 1
      %p110 = por %p108, %p109
      %p111 = scmp.ne.s32.totalorder %s103, %s106
      %p112 = scmp.eq.s32.totalorder %s20, 0
      %p113 = por %p111, %p112
      %p114 = scmp.ne.s32.totalorder %s103, %s106
      %p115 = scmp.eq.s32.totalorder %s25, 1
      %p116 = por %p114, %p115
      %p117 = scmp.ne.s32.totalorder %s106, %s107
      %p118 = scmp.eq.s32.totalorder %s25, 0
      %p119 = por %p117, %p118
      %p120 = scmp.ne.s32.totalorder %s106, %s107
      %p121 = scmp.eq.s32.totalorder %s26, 1
      %p122 = por %p120, %p121
      %p124 = scmp.ne.s32.totalorder %s107, %s123
      %p125 = scmp.eq.s32.totalorder %s26, 0
      %p126 = por %p124, %p125
      %p127 = scmp.le.s32.totalorder 1, %s20
      %p128 = scmp.lt.s32.totalorder %s20, 3
      %p129 = pnand %p127, %p128
      %p130 = pneg %p129
      // Predicated region
      $region9: #{tpu_custom_call.1} parent=5 // pred_check
        _
      $region10: #{tpu_custom_call.1} parent=5 // pred_check_branch
        %132 = sbr.rel (%p129) target = $region12
      $region11: #{tpu_custom_call.1} parent=5 // pred_region
        %s133 = ssub.s32 %s20, 1
        // Predicated region
        $region13: #{tpu_custom_call.1} parent=11 // pred_check
          %p134 = pneg %p67
        $region14: #{tpu_custom_call.1} parent=11 // pred_check_branch
          %136 = sbr.rel (%p134) target = $region16
        $region15: #{tpu_custom_call.1} parent=11 // pred_region
          %s138 = ssub.s32 320, 320
          %139 = vsyncadd [#allocation7], %s138
          %s140 = sshll.u32 [#allocation6], 4
          %s141 = int_to_ptr.vmem [resolvable:$true] %s140
          %146 = dma.hbm_to_vmem [thread:$0]  %s1, 320, %s141, [#allocation7], 64, 64, 4
        $region16: #{tpu_custom_call.1} parent=11 // pred_fallthru
          _
      $region12: #{tpu_custom_call.1} parent=5 // pred_fallthru
        _
      %p147 = scmp.lt.s32.totalorder %s20, 2
      // Predicated region
      $region17: #{tpu_custom_call.1} parent=5 // pred_check
        %p148 = pneg %p147
      $region18: #{tpu_custom_call.1} parent=5 // pred_check_branch
        %150 = sbr.rel (%p148) target = $region20
      $region19: #{tpu_custom_call.1} parent=5 // pred_region
        // Predicated region
        $region21: #{tpu_custom_call.1} parent=19 // pred_check
          %p151 = pneg %p40
        $region22: #{tpu_custom_call.1} parent=19 // pred_check_branch
          %153 = sbr.rel (%p151) target = $region24
        $region23: #{tpu_custom_call.1} parent=19 // pred_region
          %s154 = sand.u32 %s30, 1
          %s155 = scalar_lea.sflag [#allocation4], %s154
          %s156 = sand.u32 %s30, 1
          %s157 = smul.addr %s156, 128
          %s158 = scalar_lea.vmem [#allocation3], %s157
          %s160 = ssub.s32 2048, 2048
          %161 = vsyncadd %s155, %s160
          %s162 = smul.addr %s20, 32
          %s163 = smul.addr %s162, 64
          %s164 = scalar_lea.hbm %s0, %s163
          %s165 = sshll.u32 %s158, 4
          %s166 = int_to_ptr.vmem [resolvable:$true] %s165
          %171 = dma.hbm_to_vmem [thread:$0]  %s164, 2048, %s166, %s155, 64, 64, 4
        $region24: #{tpu_custom_call.1} parent=19 // pred_fallthru
          _
      $region20: #{tpu_custom_call.1} parent=5 // pred_fallthru
        _
      %p172 = scmp.le.s32.totalorder 1, %s20
      %p173 = scmp.lt.s32.totalorder %s20, 3
      %p174 = pnand %p172, %p173
      %p175 = pneg %p174
      // Predicated region
      $region25: #{tpu_custom_call.1} parent=5 // pred_check
        _
      $region26: #{tpu_custom_call.1} parent=5 // pred_check_branch
        %177 = sbr.rel (%p174) target = $region28
      $region27: #{tpu_custom_call.1} parent=5 // pred_region
        %s178 = ssub.s32 %s20, 1
        %s179 = sand.u32 %s33, 1
        %s180 = scalar_lea.sflag [#allocation4], %s179
        %s181 = sand.u32 %s33, 1
        %s182 = smul.addr %s181, 128
        %s183 = scalar_lea.vmem [#allocation3], %s182
        // Predicated region
        $region29: #{tpu_custom_call.1} parent=27 // pred_check
          %p184 = pneg %p46
        $region30: #{tpu_custom_call.1} parent=27 // pred_check_branch
          %186 = sbr.rel (%p184) target = $region32
        $region31: #{tpu_custom_call.1} parent=27 // pred_region
          %187 = dma.done %s180, 2048
        $region32: #{tpu_custom_call.1} parent=27 // pred_fallthru
          _
        // Predicated region
        $region33: #{tpu_custom_call.1} parent=27 // pred_check
          %p188 = pneg %p67
        $region34: #{tpu_custom_call.1} parent=27 // pred_check_branch
          %190 = sbr.rel (%p188) target = $region36
        $region35: #{tpu_custom_call.1} parent=27 // pred_region
          %191 = dma.done [#allocation7], 320
        $region36: #{tpu_custom_call.1} parent=27 // pred_fallthru
          _
        %s192 = sand.u32 %s33, 1
        %s193 = scalar_lea.sflag [#allocation4], %s192
        %s194 = sand.u32 %s33, 1
        %s195 = smul.addr %s194, 128
        %s196 = scalar_lea.vmem [#allocation3], %s195
        %p197 = pneg %p46
        %p198 = pneg %p43
        %p199 = pneg %p67
        %p200 = pneg %p64
        %p201 = pneg %p93
        %p202 = pneg %p90
        %s203 = sand.u32 %s80, 1
        %s204 = scalar_lea.sflag [#allocation5], %s203
        %s205 = sand.u32 %s80, 1
        %s206 = smul.addr %s205, 128
        %s207 = scalar_lea.vmem [#allocation8], %s206
        %p208 = pneg %p119
        %p209 = pneg %p116
        %s210 = sand.u32 %s106, 1
        %s211 = scalar_lea.sflag [#allocation10], %s210
        %s212 = sand.u32 %s106, 1
        %s213 = smul.addr %s212, 2
        %s214 = scalar_lea.vmem [#allocation9], %s213
        %vm216 = vcmask 27648
        %217 = vst.msk [vmem:[#allocation2] sm:$0xf] %vm216, 0
        %218 = vst.msk [vmem:[#allocation2 + $0x4] sm:$0xf] %vm216, 0
        %vm219 = vcmask 24576
        %220 = vst.msk [vmem:[#allocation2 + $0x8] sm:$0x1] %vm219, 0
        %s221 = scalar_lea.vmem [#allocation2], 204
        %222 = vst.msk [vmem:[%s221] sm:$0xf] %vm216, 0
        %223 = vst.msk [vmem:[%s221 + $0x4] sm:$0xf] %vm216, 0
        %224 = vst.msk [vmem:[%s221 + $0x8] sm:$0x1] %vm219, 0
        %vm225 = vcmask 24576
        %vm226 = vsmask.f32 256
        %vm227 = vmand %vm225, %vm226
        %v228 = vld [vmem:[#allocation2] sm:$0x1]
        %v229 = vsel %vm227, 0, %v228
        %230 = vst [vmem:[#allocation2] sm:$0x1] %v229
        %v231 = vld [vmem:[#allocation2 + $0xc] sm:$0x1]
        %v232 = vsel %vm227, 0, %v231
        %233 = vst [vmem:[#allocation2 + $0xc] sm:$0x1] %v232
        %v234 = vld [vmem:[#allocation2 + $0x18] sm:$0x1]
        %v235 = vsel %vm227, 0, %v234
        %236 = vst [vmem:[#allocation2 + $0x18] sm:$0x1] %v235
        %v237 = vld [vmem:[#allocation2 + $0x24] sm:$0x1]
        %v238 = vsel %vm227, 0, %v237
        %239 = vst [vmem:[#allocation2 + $0x24] sm:$0x1] %v238
        %v240 = vld [vmem:[#allocation2 + $0x30] sm:$0x1]
        %v241 = vsel %vm227, 0, %v240
        %242 = vst [vmem:[#allocation2 + $0x30] sm:$0x1] %v241
        %v243 = vld [vmem:[#allocation2 + $0x3c] sm:$0x1]
        %v244 = vsel %vm227, 0, %v243
        %245 = vst [vmem:[#allocation2 + $0x3c] sm:$0x1] %v244
        %v246 = vld [vmem:[#allocation2 + $0x48] sm:$0x1]
        %v247 = vsel %vm227, 0, %v246
        %248 = vst [vmem:[#allocation2 + $0x48] sm:$0x1] %v247
        %v249 = vld [vmem:[#allocation2 + $0x54] sm:$0x1]
        %v250 = vsel %vm227, 0, %v249
        %251 = vst [vmem:[#allocation2 + $0x54] sm:$0x1] %v250
        %v252 = vld [vmem:[#allocation2 + $0x60] sm:$0x1]
        %v253 = vsel %vm227, 0, %v252
        %254 = vst [vmem:[#allocation2 + $0x60] sm:$0x1] %v253
        %v255 = vld [vmem:[#allocation2 + $0x6c] sm:$0x1]
        %v256 = vsel %vm227, 0, %v255
        %257 = vst [vmem:[#allocation2 + $0x6c] sm:$0x1] %v256
        %v258 = vld [vmem:[#allocation2 + $0x78] sm:$0x1]
        %v259 = vsel %vm227, 0, %v258
        %260 = vst [vmem:[#allocation2 + $0x78] sm:$0x1] %v259
        %v261 = vld [vmem:[#allocation2 + $0x84] sm:$0x1]
        %v262 = vsel %vm227, 0, %v261
        %263 = vst [vmem:[#allocation2 + $0x84] sm:$0x1] %v262
        %v264 = vld [vmem:[#allocation2 + $0x90] sm:$0x1]
        %v265 = vsel %vm227, 0, %v264
        %266 = vst [vmem:[#allocation2 + $0x90] sm:$0x1] %v265
        %v267 = vld [vmem:[#allocation2 + $0x9c] sm:$0x1]
        %v268 = vsel %vm227, 0, %v267
        %269 = vst [vmem:[#allocation2 + $0x9c] sm:$0x1] %v268
        %v270 = vld [vmem:[#allocation2 + $0xa8] sm:$0x1]
        %v271 = vsel %vm227, 0, %v270
        %272 = vst [vmem:[#allocation2 + $0xa8] sm:$0x1] %v271
        %v273 = vld [vmem:[#allocation2 + $0xb4] sm:$0x1]
        %v274 = vsel %vm227, 0, %v273
        %275 = vst [vmem:[#allocation2 + $0xb4] sm:$0x1] %v274
        %v276 = vld [vmem:[#allocation2 + $0xc0] sm:$0x1]
        %v277 = vsel %vm227, 0, %v276
        %278 = vst [vmem:[#allocation2 + $0xc0] sm:$0x1] %v277
        %v279 = vld [vmem:[#allocation2 + $0xcc] sm:$0x1]
        %v280 = vsel %vm227, 0, %v279
        %281 = vst [vmem:[#allocation2 + $0xcc] sm:$0x1] %v280
        %vm282 = vsmask.f32 7938
        %vm283 = vmand %vm225, %vm282
        %v284 = vld [vmem:[#allocation2 + $0x8] sm:$0x1]
        %v285 = vsel %vm283, 0, %v284
        %286 = vst [vmem:[#allocation2 + $0x8] sm:$0x1] %v285
        %v287 = vld [vmem:[#allocation2 + $0x14] sm:$0x1]
        %v288 = vsel %vm283, 0, %v287
        %289 = vst [vmem:[#allocation2 + $0x14] sm:$0x1] %v288
        %v290 = vld [vmem:[#allocation2 + $0x20] sm:$0x1]
        %v291 = vsel %vm283, 0, %v290
        %292 = vst [vmem:[#allocation2 + $0x20] sm:$0x1] %v291
        %v293 = vld [vmem:[#allocation2 + $0x2c] sm:$0x1]
        %v294 = vsel %vm283, 0, %v293
        %295 = vst [vmem:[#allocation2 + $0x2c] sm:$0x1] %v294
        %v296 = vld [vmem:[#allocation2 + $0x38] sm:$0x1]
        %v297 = vsel %vm283, 0, %v296
        %298 = vst [vmem:[#allocation2 + $0x38] sm:$0x1] %v297
        %v299 = vld [vmem:[#allocation2 + $0x44] sm:$0x1]
        %v300 = vsel %vm283, 0, %v299
        %301 = vst [vmem:[#allocation2 + $0x44] sm:$0x1] %v300
        %v302 = vld [vmem:[#allocation2 + $0x50] sm:$0x1]
        %v303 = vsel %vm283, 0, %v302
        %304 = vst [vmem:[#allocation2 + $0x50] sm:$0x1] %v303
        %v305 = vld [vmem:[#allocation2 + $0x5c] sm:$0x1]
        %v306 = vsel %vm283, 0, %v305
        %307 = vst [vmem:[#allocation2 + $0x5c] sm:$0x1] %v306
        %v308 = vld [vmem:[#allocation2 + $0x68] sm:$0x1]
        %v309 = vsel %vm283, 0, %v308
        %310 = vst [vmem:[#allocation2 + $0x68] sm:$0x1] %v309
        %v311 = vld [vmem:[#allocation2 + $0x74] sm:$0x1]
        %v312 = vsel %vm283, 0, %v311
        %313 = vst [vmem:[#allocation2 + $0x74] sm:$0x1] %v312
        %v314 = vld [vmem:[#allocation2 + $0x80] sm:$0x1]
        %v315 = vsel %vm283, 0, %v314
        %316 = vst [vmem:[#allocation2 + $0x80] sm:$0x1] %v315
        %v317 = vld [vmem:[#allocation2 + $0x8c] sm:$0x1]
        %v318 = vsel %vm283, 0, %v317
        %319 = vst [vmem:[#allocation2 + $0x8c] sm:$0x1] %v318
        %v320 = vld [vmem:[#allocation2 + $0x98] sm:$0x1]
        %v321 = vsel %vm283, 0, %v320
        %322 = vst [vmem:[#allocation2 + $0x98] sm:$0x1] %v321
        %v323 = vld [vmem:[#allocation2 + $0xa4] sm:$0x1]
        %v324 = vsel %vm283, 0, %v323
        %325 = vst [vmem:[#allocation2 + $0xa4] sm:$0x1] %v324
        %v326 = vld [vmem:[#allocation2 + $0xb0] sm:$0x1]
        %v327 = vsel %vm283, 0, %v326
        %328 = vst [vmem:[#allocation2 + $0xb0] sm:$0x1] %v327
        %v329 = vld [vmem:[#allocation2 + $0xbc] sm:$0x1]
        %v330 = vsel %vm283, 0, %v329
        %331 = vst [vmem:[#allocation2 + $0xbc] sm:$0x1] %v330
        %v332 = vld [vmem:[#allocation2 + $0xc8] sm:$0x1]
        %v333 = vsel %vm283, 0, %v332
        %334 = vst [vmem:[#allocation2 + $0xc8] sm:$0x1] %v333
        %v335 = vld [vmem:[#allocation2 + $0xd4] sm:$0x1]
        %v336 = vsel %vm283, 0, %v335
        %337 = vst [vmem:[#allocation2 + $0xd4] sm:$0x1] %v336
        %v338 = vld [vmem:[%s183] sm:$0xf]
        %v339 = vld [vmem:[%s183 + $0x4] sm:$0xf]
        %v340 = vld [vmem:[%s183 + $0x8] sm:$0xf]
        %v341 = vld [vmem:[%s183 + $0xc] sm:$0xf]
        %v342 = vld [vmem:[%s183 + $0x10] sm:$0xf]
        %v343 = vld [vmem:[%s183 + $0x14] sm:$0xf]
        %v344 = vld [vmem:[%s183 + $0x18] sm:$0xf]
        %v345 = vld [vmem:[%s183 + $0x1c] sm:$0xf]
        %v346 = vld [vmem:[%s183 + $0x20] sm:$0xf]
        %v347 = vld [vmem:[%s183 + $0x24] sm:$0xf]
        %v348 = vld [vmem:[%s183 + $0x28] sm:$0xf]
        %v349 = vld [vmem:[%s183 + $0x2c] sm:$0xf]
        %v350 = vld [vmem:[%s183 + $0x30] sm:$0xf]
        %v351 = vld [vmem:[%s183 + $0x34] sm:$0xf]
        %v352 = vld [vmem:[%s183 + $0x38] sm:$0xf]
        %v353 = vld [vmem:[%s183 + $0x3c] sm:$0xf]
        %v354 = vld [vmem:[%s183 + $0x40] sm:$0xf]
        %v355 = vld [vmem:[%s183 + $0x44] sm:$0xf]
        %v356 = vld [vmem:[%s183 + $0x48] sm:$0xf]
        %v357 = vld [vmem:[%s183 + $0x4c] sm:$0xf]
        %v358 = vld [vmem:[%s183 + $0x50] sm:$0xf]
        %v359 = vld [vmem:[%s183 + $0x54] sm:$0xf]
        %v360 = vld [vmem:[%s183 + $0x58] sm:$0xf]
        %v361 = vld [vmem:[%s183 + $0x5c] sm:$0xf]
        %v362 = vld [vmem:[%s183 + $0x60] sm:$0xf]
        %v363 = vld [vmem:[%s183 + $0x64] sm:$0xf]
        %v364 = vld [vmem:[%s183 + $0x68] sm:$0xf]
        %v365 = vld [vmem:[%s183 + $0x6c] sm:$0xf]
        %v366 = vld [vmem:[%s183 + $0x70] sm:$0xf]
        %v367 = vld [vmem:[%s183 + $0x74] sm:$0xf]
        %v368 = vld [vmem:[%s183 + $0x78] sm:$0xf]
        %v369 = vld [vmem:[%s183 + $0x7c] sm:$0xf]
        %vm370 = vsmask.f32 4368
        %vm371 = vmor %vm226, %vm370
        %v373 = vshrl.u32 %v338, 16
        %v375 = vrot.slane %v373, 7
        %v376 = vshll.u32 %v338, 16
        %v378 = vor.u32 %v375, %v376
        %v379 = vrot.slane %v375, 4
        %v381 = vshrl.u32 %v339, 16
        %v383 = vrot.slane %v381, 7
        %v384 = vshll.u32 %v339, 16
        %v386 = vor.u32 %v383, %v384
        %v387 = vsel %vm371, %v379, %v386
        %v388 = vrot.slane %v383, 4
        %v390 = vshrl.u32 %v340, 16
        %v392 = vrot.slane %v390, 7
        %v393 = vshll.u32 %v340, 16
        %v395 = vor.u32 %v392, %v393
        %v396 = vrot.slane %v392, 4
        %v398 = vshrl.u32 %v341, 16
        %v400 = vrot.slane %v398, 7
        %v401 = vshll.u32 %v341, 16
        %v403 = vor.u32 %v400, %v401
        %v404 = vsel %vm371, %v396, %v403
        %v405 = vrot.slane %v400, 4
        %v407 = vshrl.u32 %v342, 16
        %v409 = vrot.slane %v407, 7
        %v410 = vshll.u32 %v342, 16
        %v412 = vor.u32 %v409, %v410
        %v413 = vrot.slane %v409, 4
        %v415 = vshrl.u32 %v343, 16
        %v417 = vrot.slane %v415, 7
        %v418 = vshll.u32 %v343, 16
        %v420 = vor.u32 %v417, %v418
        %v421 = vsel %vm371, %v413, %v420
        %v422 = vrot.slane %v417, 4
        %v424 = vshrl.u32 %v344, 16
        %v426 = vrot.slane %v424, 7
        %v427 = vshll.u32 %v344, 16
        %v429 = vor.u32 %v426, %v427
        %v430 = vrot.slane %v426, 4
        %v432 = vshrl.u32 %v345, 16
        %v434 = vrot.slane %v432, 7
        %v435 = vshll.u32 %v345, 16
        %v437 = vor.u32 %v434, %v435
        %v438 = vsel %vm371, %v430, %v437
        %v439 = vrot.slane %v434, 4
        %v441 = vshrl.u32 %v346, 16
        %v443 = vrot.slane %v441, 7
        %v444 = vshll.u32 %v346, 16
        %v446 = vor.u32 %v443, %v444
        %v447 = vrot.slane %v443, 4
        %v449 = vshrl.u32 %v347, 16
        %v451 = vrot.slane %v449, 7
        %v452 = vshll.u32 %v347, 16
        %v454 = vor.u32 %v451, %v452
        %v455 = vsel %vm371, %v447, %v454
        %v456 = vrot.slane %v451, 4
        %v458 = vshrl.u32 %v348, 16
        %v460 = vrot.slane %v458, 7
        %v461 = vshll.u32 %v348, 16
        %v463 = vor.u32 %v460, %v461
        %v464 = vrot.slane %v460, 4
        %v466 = vshrl.u32 %v349, 16
        %v468 = vrot.slane %v466, 7
        %v469 = vshll.u32 %v349, 16
        %v471 = vor.u32 %v468, %v469
        %v472 = vsel %vm371, %v464, %v471
        %v473 = vrot.slane %v468, 4
        %v475 = vshrl.u32 %v350, 16
        %v477 = vrot.slane %v475, 7
        %v478 = vshll.u32 %v350, 16
        %v480 = vor.u32 %v477, %v478
        %v481 = vrot.slane %v477, 4
        %v483 = vshrl.u32 %v351, 16
        %v485 = vrot.slane %v483, 7
        %v486 = vshll.u32 %v351, 16
        %v488 = vor.u32 %v485, %v486
        %v489 = vsel %vm371, %v481, %v488
        %v490 = vrot.slane %v485, 4
        %v492 = vshrl.u32 %v352, 16
        %v494 = vrot.slane %v492, 7
        %v495 = vshll.u32 %v352, 16
        %v497 = vor.u32 %v494, %v495
        %v498 = vrot.slane %v494, 4
        %v500 = vshrl.u32 %v353, 16
        %v502 = vrot.slane %v500, 7
        %v503 = vshll.u32 %v353, 16
        %v505 = vor.u32 %v502, %v503
        %v506 = vsel %vm371, %v498, %v505
        %v507 = vrot.slane %v502, 4
        %v509 = vshrl.u32 %v354, 16
        %v511 = vrot.slane %v509, 7
        %v512 = vshll.u32 %v354, 16
        %v514 = vor.u32 %v511, %v512
        %v515 = vrot.slane %v511, 4
        %v517 = vshrl.u32 %v355, 16
        %v519 = vrot.slane %v517, 7
        %v520 = vshll.u32 %v355, 16
        %v522 = vor.u32 %v519, %v520
        %v523 = vsel %vm371, %v515, %v522
        %v524 = vrot.slane %v519, 4
        %v526 = vshrl.u32 %v356, 16
        %v528 = vrot.slane %v526, 7
        %v529 = vshll.u32 %v356, 16
        %v531 = vor.u32 %v528, %v529
        %v532 = vrot.slane %v528, 4
        %v534 = vshrl.u32 %v357, 16
        %v536 = vrot.slane %v534, 7
        %v537 = vshll.u32 %v357, 16
        %v539 = vor.u32 %v536, %v537
        %v540 = vsel %vm371, %v532, %v539
        %v541 = vrot.slane %v536, 4
        %v543 = vshrl.u32 %v358, 16
        %v545 = vrot.slane %v543, 7
        %v546 = vshll.u32 %v358, 16
        %v548 = vor.u32 %v545, %v546
        %v549 = vrot.slane %v545, 4
        %v551 = vshrl.u32 %v359, 16
        %v553 = vrot.slane %v551, 7
        %v554 = vshll.u32 %v359, 16
        %v556 = vor.u32 %v553, %v554
        %v557 = vsel %vm371, %v549, %v556
        %v558 = vrot.slane %v553, 4
        %v560 = vshrl.u32 %v360, 16
        %v562 = vrot.slane %v560, 7
        %v563 = vshll.u32 %v360, 16
        %v565 = vor.u32 %v562, %v563
        %v566 = vrot.slane %v562, 4
        %v568 = vshrl.u32 %v361, 16
        %v570 = vrot.slane %v568, 7
        %v571 = vshll.u32 %v361, 16
        %v573 = vor.u32 %v570, %v571
        %v574 = vsel %vm371, %v566, %v573
        %v575 = vrot.slane %v570, 4
        %v577 = vshrl.u32 %v362, 16
        %v579 = vrot.slane %v577, 7
        %v580 = vshll.u32 %v362, 16
        %v582 = vor.u32 %v579, %v580
        %v583 = vrot.slane %v579, 4
        %v585 = vshrl.u32 %v363, 16
        %v587 = vrot.slane %v585, 7
        %v588 = vshll.u32 %v363, 16
        %v590 = vor.u32 %v587, %v588
        %v591 = vsel %vm371, %v583, %v590
        %v592 = vrot.slane %v587, 4
        %v594 = vshrl.u32 %v364, 16
        %v596 = vrot.slane %v594, 7
        %v597 = vshll.u32 %v364, 16
        %v599 = vor.u32 %v596, %v597
        %v600 = vrot.slane %v596, 4
        %v602 = vshrl.u32 %v365, 16
        %v604 = vrot.slane %v602, 7
        %v605 = vshll.u32 %v365, 16
        %v607 = vor.u32 %v604, %v605
        %v608 = vsel %vm371, %v600, %v607
        %v609 = vrot.slane %v604, 4
        %v611 = vshrl.u32 %v366, 16
        %v613 = vrot.slane %v611, 7
        %v614 = vshll.u32 %v366, 16
        %v616 = vor.u32 %v613, %v614
        %v617 = vrot.slane %v613, 4
        %v619 = vshrl.u32 %v367, 16
        %v621 = vrot.slane %v619, 7
        %v622 = vshll.u32 %v367, 16
        %v624 = vor.u32 %v621, %v622
        %v625 = vsel %vm371, %v617, %v624
        %v626 = vrot.slane %v621, 4
        %v628 = vshrl.u32 %v368, 16
        %v630 = vrot.slane %v628, 7
        %v631 = vshll.u32 %v368, 16
        %v633 = vor.u32 %v630, %v631
        %v634 = vrot.slane %v630, 4
        %v636 = vshrl.u32 %v369, 16
        %v638 = vrot.slane %v636, 7
        %v639 = vshll.u32 %v369, 16
        %v641 = vor.u32 %v638, %v639
        %v642 = vsel %vm371, %v634, %v641
        %v643 = vrot.slane %v638, 4
        %s692 = scalar_lea.vmem [#allocation2], 12
        %vm693 = vcmask 27648
        %vm694 = vmand %vm693, %vm282
        %v695 = vld [vmem:[%s692] sm:$0xf]
        %v696 = vsel %vm694, %v378, %v695
        %697 = vst [vmem:[%s692] sm:$0xf] %v696
        %698 = vst.msk [vmem:[%s692 + $0x4] sm:$0xf] %vm216, %v387
        %v699 = vld [vmem:[%s692 + $0x8] sm:$0x1]
        %v700 = vsel %vm227, %v388, %v699
        %701 = vst [vmem:[%s692 + $0x8] sm:$0x1] %v700
        %v702 = vld [vmem:[%s692 + $0xc] sm:$0xf]
        %v703 = vsel %vm694, %v395, %v702
        %704 = vst [vmem:[%s692 + $0xc] sm:$0xf] %v703
        %705 = vst.msk [vmem:[%s692 + $0x10] sm:$0xf] %vm216, %v404
        %v706 = vld [vmem:[%s692 + $0x14] sm:$0x1]
        %v707 = vsel %vm227, %v405, %v706
        %708 = vst [vmem:[%s692 + $0x14] sm:$0x1] %v707
        %v709 = vld [vmem:[%s692 + $0x18] sm:$0xf]
        %v710 = vsel %vm694, %v412, %v709
        %711 = vst [vmem:[%s692 + $0x18] sm:$0xf] %v710
        %712 = vst.msk [vmem:[%s692 + $0x1c] sm:$0xf] %vm216, %v421
        %v713 = vld [vmem:[%s692 + $0x20] sm:$0x1]
        %v714 = vsel %vm227, %v422, %v713
        %715 = vst [vmem:[%s692 + $0x20] sm:$0x1] %v714
        %v716 = vld [vmem:[%s692 + $0x24] sm:$0xf]
        %v717 = vsel %vm694, %v429, %v716
        %718 = vst [vmem:[%s692 + $0x24] sm:$0xf] %v717
        %719 = vst.msk [vmem:[%s692 + $0x28] sm:$0xf] %vm216, %v438
        %v720 = vld [vmem:[%s692 + $0x2c] sm:$0x1]
        %v721 = vsel %vm227, %v439, %v720
        %722 = vst [vmem:[%s692 + $0x2c] sm:$0x1] %v721
        %v723 = vld [vmem:[%s692 + $0x30] sm:$0xf]
        %v724 = vsel %vm694, %v446, %v723
        %725 = vst [vmem:[%s692 + $0x30] sm:$0xf] %v724
        %726 = vst.msk [vmem:[%s692 + $0x34] sm:$0xf] %vm216, %v455
        %v727 = vld [vmem:[%s692 + $0x38] sm:$0x1]
        %v728 = vsel %vm227, %v456, %v727
        %729 = vst [vmem:[%s692 + $0x38] sm:$0x1] %v728
        %v730 = vld [vmem:[%s692 + $0x3c] sm:$0xf]
        %v731 = vsel %vm694, %v463, %v730
        %732 = vst [vmem:[%s692 + $0x3c] sm:$0xf] %v731
        %733 = vst.msk [vmem:[%s692 + $0x40] sm:$0xf] %vm216, %v472
        %v734 = vld [vmem:[%s692 + $0x44] sm:$0x1]
        %v735 = vsel %vm227, %v473, %v734
        %736 = vst [vmem:[%s692 + $0x44] sm:$0x1] %v735
        %v737 = vld [vmem:[%s692 + $0x48] sm:$0xf]
        %v738 = vsel %vm694, %v480, %v737
        %739 = vst [vmem:[%s692 + $0x48] sm:$0xf] %v738
        %740 = vst.msk [vmem:[%s692 + $0x4c] sm:$0xf] %vm216, %v489
        %v741 = vld [vmem:[%s692 + $0x50] sm:$0x1]
        %v742 = vsel %vm227, %v490, %v741
        %743 = vst [vmem:[%s692 + $0x50] sm:$0x1] %v742
        %v744 = vld [vmem:[%s692 + $0x54] sm:$0xf]
        %v745 = vsel %vm694, %v497, %v744
        %746 = vst [vmem:[%s692 + $0x54] sm:$0xf] %v745
        %747 = vst.msk [vmem:[%s692 + $0x58] sm:$0xf] %vm216, %v506
        %v748 = vld [vmem:[%s692 + $0x5c] sm:$0x1]
        %v749 = vsel %vm227, %v507, %v748
        %750 = vst [vmem:[%s692 + $0x5c] sm:$0x1] %v749
        %v751 = vld [vmem:[%s692 + $0x60] sm:$0xf]
        %v752 = vsel %vm694, %v514, %v751
        %753 = vst [vmem:[%s692 + $0x60] sm:$0xf] %v752
        %754 = vst.msk [vmem:[%s692 + $0x64] sm:$0xf] %vm216, %v523
        %v755 = vld [vmem:[%s692 + $0x68] sm:$0x1]
        %v756 = vsel %vm227, %v524, %v755
        %757 = vst [vmem:[%s692 + $0x68] sm:$0x1] %v756
        %v758 = vld [vmem:[%s692 + $0x6c] sm:$0xf]
        %v759 = vsel %vm694, %v531, %v758
        %760 = vst [vmem:[%s692 + $0x6c] sm:$0xf] %v759
        %761 = vst.msk [vmem:[%s692 + $0x70] sm:$0xf] %vm216, %v540
        %v762 = vld [vmem:[%s692 + $0x74] sm:$0x1]
        %v763 = vsel %vm227, %v541, %v762
        %764 = vst [vmem:[%s692 + $0x74] sm:$0x1] %v763
        %v765 = vld [vmem:[%s692 + $0x78] sm:$0xf]
        %v766 = vsel %vm694, %v548, %v765
        %767 = vst [vmem:[%s692 + $0x78] sm:$0xf] %v766
        %768 = vst.msk [vmem:[%s692 + $0x7c] sm:$0xf] %vm216, %v557
        %v769 = vld [vmem:[%s692 + $0x80] sm:$0x1]
        %v770 = vsel %vm227, %v558, %v769
        %771 = vst [vmem:[%s692 + $0x80] sm:$0x1] %v770
        %v772 = vld [vmem:[%s692 + $0x84] sm:$0xf]
        %v773 = vsel %vm694, %v565, %v772
        %774 = vst [vmem:[%s692 + $0x84] sm:$0xf] %v773
        %775 = vst.msk [vmem:[%s692 + $0x88] sm:$0xf] %vm216, %v574
        %v776 = vld [vmem:[%s692 + $0x8c] sm:$0x1]
        %v777 = vsel %vm227, %v575, %v776
        %778 = vst [vmem:[%s692 + $0x8c] sm:$0x1] %v777
        %v779 = vld [vmem:[%s692 + $0x90] sm:$0xf]
        %v780 = vsel %vm694, %v582, %v779
        %781 = vst [vmem:[%s692 + $0x90] sm:$0xf] %v780
        %782 = vst.msk [vmem:[%s692 + $0x94] sm:$0xf] %vm216, %v591
        %v783 = vld [vmem:[%s692 + $0x98] sm:$0x1]
        %v784 = vsel %vm227, %v592, %v783
        %785 = vst [vmem:[%s692 + $0x98] sm:$0x1] %v784
        %v786 = vld [vmem:[%s692 + $0x9c] sm:$0xf]
        %v787 = vsel %vm694, %v599, %v786
        %788 = vst [vmem:[%s692 + $0x9c] sm:$0xf] %v787
        %789 = vst.msk [vmem:[%s692 + $0xa0] sm:$0xf] %vm216, %v608
        %v790 = vld [vmem:[%s692 + $0xa4] sm:$0x1]
        %v791 = vsel %vm227, %v609, %v790
        %792 = vst [vmem:[%s692 + $0xa4] sm:$0x1] %v791
        %v793 = vld [vmem:[%s692 + $0xa8] sm:$0xf]
        %v794 = vsel %vm694, %v616, %v793
        %795 = vst [vmem:[%s692 + $0xa8] sm:$0xf] %v794
        %796 = vst.msk [vmem:[%s692 + $0xac] sm:$0xf] %vm216, %v625
        %v797 = vld [vmem:[%s692 + $0xb0] sm:$0x1]
        %v798 = vsel %vm227, %v626, %v797
        %799 = vst [vmem:[%s692 + $0xb0] sm:$0x1] %v798
        %v800 = vld [vmem:[%s692 + $0xb4] sm:$0xf]
        %v801 = vsel %vm694, %v633, %v800
        %802 = vst [vmem:[%s692 + $0xb4] sm:$0xf] %v801
        %803 = vst.msk [vmem:[%s692 + $0xb8] sm:$0xf] %vm216, %v642
        %v804 = vld [vmem:[%s692 + $0xbc] sm:$0x1]
        %v805 = vsel %vm227, %v643, %v804
        %806 = vst [vmem:[%s692 + $0xbc] sm:$0x1] %v805
        %v807 = vld [vmem:[#allocation2] sm:$0xf]
        %v808 = vld [vmem:[#allocation2 + $0x4] sm:$0xf]
        %v809 = vld [vmem:[#allocation2 + $0x8] sm:$0x1]
        %v810 = vld [vmem:[#allocation2 + $0xc] sm:$0xf]
        %v811 = vld [vmem:[#allocation2 + $0x10] sm:$0xf]
        %v812 = vld [vmem:[#allocation2 + $0x14] sm:$0x1]
        %v813 = vld [vmem:[#allocation2 + $0x18] sm:$0xf]
        %v814 = vld [vmem:[#allocation2 + $0x1c] sm:$0xf]
        %v815 = vld [vmem:[#allocation2 + $0x20] sm:$0x1]
        %v816 = vld [vmem:[#allocation2 + $0x24] sm:$0xf]
        %v817 = vld [vmem:[#allocation2 + $0x28] sm:$0xf]
        %v818 = vld [vmem:[#allocation2 + $0x2c] sm:$0x1]
        %v819 = vld [vmem:[#allocation2 + $0x30] sm:$0xf]
        %v820 = vld [vmem:[#allocation2 + $0x34] sm:$0xf]
        %v821 = vld [vmem:[#allocation2 + $0x38] sm:$0x1]
        %v822 = vld [vmem:[#allocation2 + $0x3c] sm:$0xf]
        %v823 = vld [vmem:[#allocation2 + $0x40] sm:$0xf]
        %v824 = vld [vmem:[#allocation2 + $0x44] sm:$0x1]
        %v825 = vld [vmem:[#allocation2 + $0x48] sm:$0xf]
        %v826 = vld [vmem:[#allocation2 + $0x4c] sm:$0xf]
        %v827 = vld [vmem:[#allocation2 + $0x50] sm:$0x1]
        %v828 = vld [vmem:[#allocation2 + $0x54] sm:$0xf]
        %v829 = vld [vmem:[#allocation2 + $0x58] sm:$0xf]
        %v830 = vld [vmem:[#allocation2 + $0x5c] sm:$0x1]
        %v831 = vld [vmem:[#allocation2 + $0x60] sm:$0xf]
        %v832 = vld [vmem:[#allocation2 + $0x64] sm:$0xf]
        %v833 = vld [vmem:[#allocation2 + $0x68] sm:$0x1]
        %v834 = vld [vmem:[#allocation2 + $0x6c] sm:$0xf]
        %v835 = vld [vmem:[#allocation2 + $0x70] sm:$0xf]
        %v836 = vld [vmem:[#allocation2 + $0x74] sm:$0x1]
        %v837 = vld [vmem:[#allocation2 + $0x78] sm:$0xf]
        %v838 = vld [vmem:[#allocation2 + $0x7c] sm:$0xf]
        %v839 = vld [vmem:[#allocation2 + $0x80] sm:$0x1]
        %v840 = vld [vmem:[#allocation2 + $0x84] sm:$0xf]
        %v841 = vld [vmem:[#allocation2 + $0x88] sm:$0xf]
        %v842 = vld [vmem:[#allocation2 + $0x8c] sm:$0x1]
        %v843 = vld [vmem:[#allocation2 + $0x90] sm:$0xf]
        %v844 = vld [vmem:[#allocation2 + $0x94] sm:$0xf]
        %v845 = vld [vmem:[#allocation2 + $0x98] sm:$0x1]
        %v846 = vld [vmem:[#allocation2 + $0x9c] sm:$0xf]
        %v847 = vld [vmem:[#allocation2 + $0xa0] sm:$0xf]
        %v848 = vld [vmem:[#allocation2 + $0xa4] sm:$0x1]
        %v849 = vld [vmem:[#allocation2 + $0xa8] sm:$0xf]
        %v850 = vld [vmem:[#allocation2 + $0xac] sm:$0xf]
        %v851 = vld [vmem:[#allocation2 + $0xb0] sm:$0x1]
        %v852 = vld [vmem:[#allocation2 + $0xb4] sm:$0xf]
        %v853 = vld [vmem:[#allocation2 + $0xb8] sm:$0xf]
        %v854 = vld [vmem:[#allocation2 + $0xbc] sm:$0x1]
        %v855 = vld [vmem:[%s692] sm:$0xf]
        %v856 = vld [vmem:[%s692 + $0x4] sm:$0xf]
        %v857 = vld [vmem:[%s692 + $0x8] sm:$0x1]
        %v858 = vld [vmem:[%s692 + $0xc] sm:$0xf]
        %v859 = vld [vmem:[%s692 + $0x10] sm:$0xf]
        %v860 = vld [vmem:[%s692 + $0x14] sm:$0x1]
        %v861 = vld [vmem:[%s692 + $0x18] sm:$0xf]
        %v862 = vld [vmem:[%s692 + $0x1c] sm:$0xf]
        %v863 = vld [vmem:[%s692 + $0x20] sm:$0x1]
        %v864 = vld [vmem:[%s692 + $0x24] sm:$0xf]
        %v865 = vld [vmem:[%s692 + $0x28] sm:$0xf]
        %v866 = vld [vmem:[%s692 + $0x2c] sm:$0x1]
        %v867 = vld [vmem:[%s692 + $0x30] sm:$0xf]
        %v868 = vld [vmem:[%s692 + $0x34] sm:$0xf]
        %v869 = vld [vmem:[%s692 + $0x38] sm:$0x1]
        %v870 = vld [vmem:[%s692 + $0x3c] sm:$0xf]
        %v871 = vld [vmem:[%s692 + $0x40] sm:$0xf]
        %v872 = vld [vmem:[%s692 + $0x44] sm:$0x1]
        %v873 = vld [vmem:[%s692 + $0x48] sm:$0xf]
        %v874 = vld [vmem:[%s692 + $0x4c] sm:$0xf]
        %v875 = vld [vmem:[%s692 + $0x50] sm:$0x1]
        %v876 = vld [vmem:[%s692 + $0x54] sm:$0xf]
        %v877 = vld [vmem:[%s692 + $0x58] sm:$0xf]
        %v878 = vld [vmem:[%s692 + $0x5c] sm:$0x1]
        %v879 = vld [vmem:[%s692 + $0x60] sm:$0xf]
        %v880 = vld [vmem:[%s692 + $0x64] sm:$0xf]
        %v881 = vld [vmem:[%s692 + $0x68] sm:$0x1]
        %v882 = vld [vmem:[%s692 + $0x6c] sm:$0xf]
        %v883 = vld [vmem:[%s692 + $0x70] sm:$0xf]
        %v884 = vld [vmem:[%s692 + $0x74] sm:$0x1]
        %v885 = vld [vmem:[%s692 + $0x78] sm:$0xf]
        %v886 = vld [vmem:[%s692 + $0x7c] sm:$0xf]
        %v887 = vld [vmem:[%s692 + $0x80] sm:$0x1]
        %v888 = vld [vmem:[%s692 + $0x84] sm:$0xf]
        %v889 = vld [vmem:[%s692 + $0x88] sm:$0xf]
        %v890 = vld [vmem:[%s692 + $0x8c] sm:$0x1]
        %v891 = vld [vmem:[%s692 + $0x90] sm:$0xf]
        %v892 = vld [vmem:[%s692 + $0x94] sm:$0xf]
        %v893 = vld [vmem:[%s692 + $0x98] sm:$0x1]
        %v894 = vld [vmem:[%s692 + $0x9c] sm:$0xf]
        %v895 = vld [vmem:[%s692 + $0xa0] sm:$0xf]
        %v896 = vld [vmem:[%s692 + $0xa4] sm:$0x1]
        %v897 = vld [vmem:[%s692 + $0xa8] sm:$0xf]
        %v898 = vld [vmem:[%s692 + $0xac] sm:$0xf]
        %v899 = vld [vmem:[%s692 + $0xb0] sm:$0x1]
        %v900 = vld [vmem:[%s692 + $0xb4] sm:$0xf]
        %v901 = vld [vmem:[%s692 + $0xb8] sm:$0xf]
        %v902 = vld [vmem:[%s692 + $0xbc] sm:$0x1]
        %s903 = scalar_lea.vmem [#allocation2], 24
        %v904 = vld [vmem:[%s903] sm:$0xf]
        %v905 = vld [vmem:[%s903 + $0x4] sm:$0xf]
        %v906 = vld [vmem:[%s903 + $0x8] sm:$0x1]
        %v907 = vld [vmem:[%s903 + $0xc] sm:$0xf]
        %v908 = vld [vmem:[%s903 + $0x10] sm:$0xf]
        %v909 = vld [vmem:[%s903 + $0x14] sm:$0x1]
        %v910 = vld [vmem:[%s903 + $0x18] sm:$0xf]
        %v911 = vld [vmem:[%s903 + $0x1c] sm:$0xf]
        %v912 = vld [vmem:[%s903 + $0x20] sm:$0x1]
        %v913 = vld [vmem:[%s903 + $0x24] sm:$0xf]
        %v914 = vld [vmem:[%s903 + $0x28] sm:$0xf]
        %v915 = vld [vmem:[%s903 + $0x2c] sm:$0x1]
        %v916 = vld [vmem:[%s903 + $0x30] sm:$0xf]
        %v917 = vld [vmem:[%s903 + $0x34] sm:$0xf]
        %v918 = vld [vmem:[%s903 + $0x38] sm:$0x1]
        %v919 = vld [vmem:[%s903 + $0x3c] sm:$0xf]
        %v920 = vld [vmem:[%s903 + $0x40] sm:$0xf]
        %v921 = vld [vmem:[%s903 + $0x44] sm:$0x1]
        %v922 = vld [vmem:[%s903 + $0x48] sm:$0xf]
        %v923 = vld [vmem:[%s903 + $0x4c] sm:$0xf]
        %v924 = vld [vmem:[%s903 + $0x50] sm:$0x1]
        %v925 = vld [vmem:[%s903 + $0x54] sm:$0xf]
        %v926 = vld [vmem:[%s903 + $0x58] sm:$0xf]
        %v927 = vld [vmem:[%s903 + $0x5c] sm:$0x1]
        %v928 = vld [vmem:[%s903 + $0x60] sm:$0xf]
        %v929 = vld [vmem:[%s903 + $0x64] sm:$0xf]
        %v930 = vld [vmem:[%s903 + $0x68] sm:$0x1]
        %v931 = vld [vmem:[%s903 + $0x6c] sm:$0xf]
        %v932 = vld [vmem:[%s903 + $0x70] sm:$0xf]
        %v933 = vld [vmem:[%s903 + $0x74] sm:$0x1]
        %v934 = vld [vmem:[%s903 + $0x78] sm:$0xf]
        %v935 = vld [vmem:[%s903 + $0x7c] sm:$0xf]
        %v936 = vld [vmem:[%s903 + $0x80] sm:$0x1]
        %v937 = vld [vmem:[%s903 + $0x84] sm:$0xf]
        %v938 = vld [vmem:[%s903 + $0x88] sm:$0xf]
        %v939 = vld [vmem:[%s903 + $0x8c] sm:$0x1]
        %v940 = vld [vmem:[%s903 + $0x90] sm:$0xf]
        %v941 = vld [vmem:[%s903 + $0x94] sm:$0xf]
        %v942 = vld [vmem:[%s903 + $0x98] sm:$0x1]
        %v943 = vld [vmem:[%s903 + $0x9c] sm:$0xf]
        %v944 = vld [vmem:[%s903 + $0xa0] sm:$0xf]
        %v945 = vld [vmem:[%s903 + $0xa4] sm:$0x1]
        %v946 = vld [vmem:[%s903 + $0xa8] sm:$0xf]
        %v947 = vld [vmem:[%s903 + $0xac] sm:$0xf]
        %v948 = vld [vmem:[%s903 + $0xb0] sm:$0x1]
        %v949 = vld [vmem:[%s903 + $0xb4] sm:$0xf]
        %v950 = vld [vmem:[%s903 + $0xb8] sm:$0xf]
        %v951 = vld [vmem:[%s903 + $0xbc] sm:$0x1]
        %v984 = vunpack.c.l.b16 %v807
        %v985 = vunpack.c.l.b16 %v808
        %v986 = vunpack.c.l.b16 %v810
        %v987 = vunpack.c.l.b16 %v811
        %v988 = vunpack.c.l.b16 %v813
        %v989 = vunpack.c.l.b16 %v814
        %v990 = vunpack.c.l.b16 %v816
        %v991 = vunpack.c.l.b16 %v817
        %v992 = vunpack.c.l.b16 %v819
        %v993 = vunpack.c.l.b16 %v820
        %v994 = vunpack.c.l.b16 %v822
        %v995 = vunpack.c.l.b16 %v823
        %v996 = vunpack.c.l.b16 %v825
        %v997 = vunpack.c.l.b16 %v826
        %v998 = vunpack.c.l.b16 %v828
        %v999 = vunpack.c.l.b16 %v829
        %v1000 = vunpack.c.l.b16 %v831
        %v1001 = vunpack.c.l.b16 %v832
        %v1002 = vunpack.c.l.b16 %v834
        %v1003 = vunpack.c.l.b16 %v835
        %v1004 = vunpack.c.l.b16 %v837
        %v1005 = vunpack.c.l.b16 %v838
        %v1006 = vunpack.c.l.b16 %v840
        %v1007 = vunpack.c.l.b16 %v841
        %v1008 = vunpack.c.l.b16 %v843
        %v1009 = vunpack.c.l.b16 %v844
        %v1010 = vunpack.c.l.b16 %v846
        %v1011 = vunpack.c.l.b16 %v847
        %v1012 = vunpack.c.l.b16 %v849
        %v1013 = vunpack.c.l.b16 %v850
        %v1014 = vunpack.c.l.b16 %v852
        %v1015 = vunpack.c.l.b16 %v853
        %v1016 = vpack.c.b16 %v985, %v984
        %v1017 = vpack.c.b16 %v987, %v986
        %v1018 = vpack.c.b16 %v989, %v988
        %v1019 = vpack.c.b16 %v991, %v990
        %v1020 = vpack.c.b16 %v993, %v992
        %v1021 = vpack.c.b16 %v995, %v994
        %v1022 = vpack.c.b16 %v997, %v996
        %v1023 = vpack.c.b16 %v999, %v998
        %v1024 = vpack.c.b16 %v1001, %v1000
        %v1025 = vpack.c.b16 %v1003, %v1002
        %v1026 = vpack.c.b16 %v1005, %v1004
        %v1027 = vpack.c.b16 %v1007, %v1006
        %v1028 = vpack.c.b16 %v1009, %v1008
        %v1029 = vpack.c.b16 %v1011, %v1010
        %v1030 = vpack.c.b16 %v1013, %v1012
        %v1031 = vpack.c.b16 %v1015, %v1014
        %v1048 = vunpack.c.l.b16 %v809
        %v1049 = vunpack.c.l.b16 %v812
        %v1050 = vunpack.c.l.b16 %v815
        %v1051 = vunpack.c.l.b16 %v818
        %v1052 = vunpack.c.l.b16 %v821
        %v1053 = vunpack.c.l.b16 %v824
        %v1054 = vunpack.c.l.b16 %v827
        %v1055 = vunpack.c.l.b16 %v830
        %v1056 = vunpack.c.l.b16 %v833
        %v1057 = vunpack.c.l.b16 %v836
        %v1058 = vunpack.c.l.b16 %v839
        %v1059 = vunpack.c.l.b16 %v842
        %v1060 = vunpack.c.l.b16 %v845
        %v1061 = vunpack.c.l.b16 %v848
        %v1062 = vunpack.c.l.b16 %v851
        %v1063 = vunpack.c.l.b16 %v854
        %v1064 = vpack.c.b16 %v1048, %v1048
        %v1065 = vpack.c.b16 %v1049, %v1049
        %v1066 = vpack.c.b16 %v1050, %v1050
        %v1067 = vpack.c.b16 %v1051, %v1051
        %v1068 = vpack.c.b16 %v1052, %v1052
        %v1069 = vpack.c.b16 %v1053, %v1053
        %v1070 = vpack.c.b16 %v1054, %v1054
        %v1071 = vpack.c.b16 %v1055, %v1055
        %v1072 = vpack.c.b16 %v1056, %v1056
        %v1073 = vpack.c.b16 %v1057, %v1057
        %v1074 = vpack.c.b16 %v1058, %v1058
        %v1075 = vpack.c.b16 %v1059, %v1059
        %v1076 = vpack.c.b16 %v1060, %v1060
        %v1077 = vpack.c.b16 %v1061, %v1061
        %v1078 = vpack.c.b16 %v1062, %v1062
        %v1079 = vpack.c.b16 %v1063, %v1063
        %vm1080 = vsmask.f32 7424
        %v1082 = vshrl.u32 %v1016, 16
        %v1084 = vshll.u32 %v1016, 16
        %v1086 = vrot.slane %v1084, 1
        %v1087 = vor.u32 %v1082, %v1086
        %v1089 = vshll.u32 %v1064, 16
        %v1091 = vrot.slane %v1089, 1
        %v1092 = vsel %vm1080, %v1087, %v1091
        %v1094 = vshrl.u32 %v1017, 16
        %v1096 = vshll.u32 %v1017, 16
        %v1098 = vrot.slane %v1096, 1
        %v1099 = vor.u32 %v1094, %v1098
        %v1101 = vshll.u32 %v1065, 16
        %v1103 = vrot.slane %v1101, 1
        %v1104 = vsel %vm1080, %v1099, %v1103
        %v1106 = vshrl.u32 %v1018, 16
        %v1108 = vshll.u32 %v1018, 16
        %v1110 = vrot.slane %v1108, 1
        %v1111 = vor.u32 %v1106, %v1110
        %v1113 = vshll.u32 %v1066, 16
        %v1115 = vrot.slane %v1113, 1
        %v1116 = vsel %vm1080, %v1111, %v1115
        %v1118 = vshrl.u32 %v1019, 16
        %v1120 = vshll.u32 %v1019, 16
        %v1122 = vrot.slane %v1120, 1
        %v1123 = vor.u32 %v1118, %v1122
        %v1125 = vshll.u32 %v1067, 16
        %v1127 = vrot.slane %v1125, 1
        %v1128 = vsel %vm1080, %v1123, %v1127
        %v1130 = vshrl.u32 %v1020, 16
        %v1132 = vshll.u32 %v1020, 16
        %v1134 = vrot.slane %v1132, 1
        %v1135 = vor.u32 %v1130, %v1134
        %v1137 = vshll.u32 %v1068, 16
        %v1139 = vrot.slane %v1137, 1
        %v1140 = vsel %vm1080, %v1135, %v1139
        %v1142 = vshrl.u32 %v1021, 16
        %v1144 = vshll.u32 %v1021, 16
        %v1146 = vrot.slane %v1144, 1
        %v1147 = vor.u32 %v1142, %v1146
        %v1149 = vshll.u32 %v1069, 16
        %v1151 = vrot.slane %v1149, 1
        %v1152 = vsel %vm1080, %v1147, %v1151
        %v1154 = vshrl.u32 %v1022, 16
        %v1156 = vshll.u32 %v1022, 16
        %v1158 = vrot.slane %v1156, 1
        %v1159 = vor.u32 %v1154, %v1158
        %v1161 = vshll.u32 %v1070, 16
        %v1163 = vrot.slane %v1161, 1
        %v1164 = vsel %vm1080, %v1159, %v1163
        %v1166 = vshrl.u32 %v1023, 16
        %v1168 = vshll.u32 %v1023, 16
        %v1170 = vrot.slane %v1168, 1
        %v1171 = vor.u32 %v1166, %v1170
        %v1173 = vshll.u32 %v1071, 16
        %v1175 = vrot.slane %v1173, 1
        %v1176 = vsel %vm1080, %v1171, %v1175
        %v1178 = vshrl.u32 %v1024, 16
        %v1180 = vshll.u32 %v1024, 16
        %v1182 = vrot.slane %v1180, 1
        %v1183 = vor.u32 %v1178, %v1182
        %v1185 = vshll.u32 %v1072, 16
        %v1187 = vrot.slane %v1185, 1
        %v1188 = vsel %vm1080, %v1183, %v1187
        %v1190 = vshrl.u32 %v1025, 16
        %v1192 = vshll.u32 %v1025, 16
        %v1194 = vrot.slane %v1192, 1
        %v1195 = vor.u32 %v1190, %v1194
        %v1197 = vshll.u32 %v1073, 16
        %v1199 = vrot.slane %v1197, 1
        %v1200 = vsel %vm1080, %v1195, %v1199
        %v1202 = vshrl.u32 %v1026, 16
        %v1204 = vshll.u32 %v1026, 16
        %v1206 = vrot.slane %v1204, 1
        %v1207 = vor.u32 %v1202, %v1206
        %v1209 = vshll.u32 %v1074, 16
        %v1211 = vrot.slane %v1209, 1
        %v1212 = vsel %vm1080, %v1207, %v1211
        %v1214 = vshrl.u32 %v1027, 16
        %v1216 = vshll.u32 %v1027, 16
        %v1218 = vrot.slane %v1216, 1
        %v1219 = vor.u32 %v1214, %v1218
        %v1221 = vshll.u32 %v1075, 16
        %v1223 = vrot.slane %v1221, 1
        %v1224 = vsel %vm1080, %v1219, %v1223
        %v1226 = vshrl.u32 %v1028, 16
        %v1228 = vshll.u32 %v1028, 16
        %v1230 = vrot.slane %v1228, 1
        %v1231 = vor.u32 %v1226, %v1230
        %v1233 = vshll.u32 %v1076, 16
        %v1235 = vrot.slane %v1233, 1
        %v1236 = vsel %vm1080, %v1231, %v1235
        %v1238 = vshrl.u32 %v1029, 16
        %v1240 = vshll.u32 %v1029, 16
        %v1242 = vrot.slane %v1240, 1
        %v1243 = vor.u32 %v1238, %v1242
        %v1245 = vshll.u32 %v1077, 16
        %v1247 = vrot.slane %v1245, 1
        %v1248 = vsel %vm1080, %v1243, %v1247
        %v1250 = vshrl.u32 %v1030, 16
        %v1252 = vshll.u32 %v1030, 16
        %v1254 = vrot.slane %v1252, 1
        %v1255 = vor.u32 %v1250, %v1254
        %v1257 = vshll.u32 %v1078, 16
        %v1259 = vrot.slane %v1257, 1
        %v1260 = vsel %vm1080, %v1255, %v1259
        %v1262 = vshrl.u32 %v1031, 16
        %v1264 = vshll.u32 %v1031, 16
        %v1266 = vrot.slane %v1264, 1
        %v1267 = vor.u32 %v1262, %v1266
        %v1269 = vshll.u32 %v1079, 16
        %v1271 = vrot.slane %v1269, 1
        %v1272 = vsel %vm1080, %v1267, %v1271
        %1273 = vrot.lane.b32.xlu0 %v1092, 4
        %v1274 = vpop.permute.xlu0 %1273
        %1275 = vrot.lane.b32.xlu0 %v1104, 4
        %v1276 = vpop.permute.xlu0 %1275
        %1277 = vrot.lane.b32.xlu0 %v1116, 4
        %v1278 = vpop.permute.xlu0 %1277
        %1279 = vrot.lane.b32.xlu0 %v1128, 4
        %v1280 = vpop.permute.xlu0 %1279
        %1281 = vrot.lane.b32.xlu0 %v1140, 4
        %v1282 = vpop.permute.xlu0 %1281
        %1283 = vrot.lane.b32.xlu0 %v1152, 4
        %v1284 = vpop.permute.xlu0 %1283
        %1285 = vrot.lane.b32.xlu0 %v1164, 4
        %v1286 = vpop.permute.xlu0 %1285
        %1287 = vrot.lane.b32.xlu0 %v1176, 4
        %v1288 = vpop.permute.xlu0 %1287
        %1289 = vrot.lane.b32.xlu0 %v1188, 4
        %v1290 = vpop.permute.xlu0 %1289
        %1291 = vrot.lane.b32.xlu0 %v1200, 4
        %v1292 = vpop.permute.xlu0 %1291
        %1293 = vrot.lane.b32.xlu0 %v1212, 4
        %v1294 = vpop.permute.xlu0 %1293
        %1295 = vrot.lane.b32.xlu0 %v1224, 4
        %v1296 = vpop.permute.xlu0 %1295
        %1297 = vrot.lane.b32.xlu0 %v1236, 4
        %v1298 = vpop.permute.xlu0 %1297
        %1299 = vrot.lane.b32.xlu0 %v1248, 4
        %v1300 = vpop.permute.xlu0 %1299
        %1301 = vrot.lane.b32.xlu0 %v1260, 4
        %v1302 = vpop.permute.xlu0 %1301
        %1303 = vrot.lane.b32.xlu0 %v1272, 4
        %v1304 = vpop.permute.xlu0 %1303
        %vm1305 = vcmask 1046528
        %v1306 = vrot.slane %v1016, 1
        %v1307 = vrot.slane %v1064, 1
        %v1308 = vsel %vm1305, %v1306, %v1307
        %v1309 = vrot.slane %v1017, 1
        %v1310 = vrot.slane %v1065, 1
        %v1311 = vsel %vm1305, %v1309, %v1310
        %v1312 = vrot.slane %v1018, 1
        %v1313 = vrot.slane %v1066, 1
        %v1314 = vsel %vm1305, %v1312, %v1313
        %v1315 = vrot.slane %v1019, 1
        %v1316 = vrot.slane %v1067, 1
        %v1317 = vsel %vm1305, %v1315, %v1316
        %v1318 = vrot.slane %v1020, 1
        %v1319 = vrot.slane %v1068, 1
        %v1320 = vsel %vm1305, %v1318, %v1319
        %v1321 = vrot.slane %v1021, 1
        %v1322 = vrot.slane %v1069, 1
        %v1323 = vsel %vm1305, %v1321, %v1322
        %v1324 = vrot.slane %v1022, 1
        %v1325 = vrot.slane %v1070, 1
        %v1326 = vsel %vm1305, %v1324, %v1325
        %v1327 = vrot.slane %v1023, 1
        %v1328 = vrot.slane %v1071, 1
        %v1329 = vsel %vm1305, %v1327, %v1328
        %v1330 = vrot.slane %v1024, 1
        %v1331 = vrot.slane %v1072, 1
        %v1332 = vsel %vm1305, %v1330, %v1331
        %v1333 = vrot.slane %v1025, 1
        %v1334 = vrot.slane %v1073, 1
        %v1335 = vsel %vm1305, %v1333, %v1334
        %v1336 = vrot.slane %v1026, 1
        %v1337 = vrot.slane %v1074, 1
        %v1338 = vsel %vm1305, %v1336, %v1337
        %v1339 = vrot.slane %v1027, 1
        %v1340 = vrot.slane %v1075, 1
        %v1341 = vsel %vm1305, %v1339, %v1340
        %v1342 = vrot.slane %v1028, 1
        %v1343 = vrot.slane %v1076, 1
        %v1344 = vsel %vm1305, %v1342, %v1343
        %v1345 = vrot.slane %v1029, 1
        %v1346 = vrot.slane %v1077, 1
        %v1347 = vsel %vm1305, %v1345, %v1346
        %v1348 = vrot.slane %v1030, 1
        %v1349 = vrot.slane %v1078, 1
        %v1350 = vsel %vm1305, %v1348, %v1349
        %v1351 = vrot.slane %v1031, 1
        %v1352 = vrot.slane %v1079, 1
        %v1353 = vsel %vm1305, %v1351, %v1352
        %1354 = vrot.lane.b32.xlu0 %v1308, 8
        %v1355 = vpop.permute.xlu0 %1354
        %1356 = vrot.lane.b32.xlu0 %v1311, 8
        %v1357 = vpop.permute.xlu0 %1356
        %1358 = vrot.lane.b32.xlu0 %v1314, 8
        %v1359 = vpop.permute.xlu0 %1358
        %1360 = vrot.lane.b32.xlu0 %v1317, 8
        %v1361 = vpop.permute.xlu0 %1360
        %1362 = vrot.lane.b32.xlu0 %v1320, 8
        %v1363 = vpop.permute.xlu0 %1362
        %1364 = vrot.lane.b32.xlu0 %v1323, 8
        %v1365 = vpop.permute.xlu0 %1364
        %1366 = vrot.lane.b32.xlu0 %v1326, 8
        %v1367 = vpop.permute.xlu0 %1366
        %1368 = vrot.lane.b32.xlu0 %v1329, 8
        %v1369 = vpop.permute.xlu0 %1368
        %1370 = vrot.lane.b32.xlu0 %v1332, 8
        %v1371 = vpop.permute.xlu0 %1370
        %1372 = vrot.lane.b32.xlu0 %v1335, 8
        %v1373 = vpop.permute.xlu0 %1372
        %1374 = vrot.lane.b32.xlu0 %v1338, 8
        %v1375 = vpop.permute.xlu0 %1374
        %1376 = vrot.lane.b32.xlu0 %v1341, 8
        %v1377 = vpop.permute.xlu0 %1376
        %1378 = vrot.lane.b32.xlu0 %v1344, 8
        %v1379 = vpop.permute.xlu0 %1378
        %1380 = vrot.lane.b32.xlu0 %v1347, 8
        %v1381 = vpop.permute.xlu0 %1380
        %1382 = vrot.lane.b32.xlu0 %v1350, 8
        %v1383 = vpop.permute.xlu0 %1382
        %1384 = vrot.lane.b32.xlu0 %v1353, 8
        %v1385 = vpop.permute.xlu0 %1384
        %v1418 = vunpack.c.l.b16 %v855
        %v1419 = vunpack.c.l.b16 %v856
        %v1420 = vunpack.c.l.b16 %v858
        %v1421 = vunpack.c.l.b16 %v859
        %v1422 = vunpack.c.l.b16 %v861
        %v1423 = vunpack.c.l.b16 %v862
        %v1424 = vunpack.c.l.b16 %v864
        %v1425 = vunpack.c.l.b16 %v865
        %v1426 = vunpack.c.l.b16 %v867
        %v1427 = vunpack.c.l.b16 %v868
        %v1428 = vunpack.c.l.b16 %v870
        %v1429 = vunpack.c.l.b16 %v871
        %v1430 = vunpack.c.l.b16 %v873
        %v1431 = vunpack.c.l.b16 %v874
        %v1432 = vunpack.c.l.b16 %v876
        %v1433 = vunpack.c.l.b16 %v877
        %v1434 = vunpack.c.l.b16 %v879
        %v1435 = vunpack.c.l.b16 %v880
        %v1436 = vunpack.c.l.b16 %v882
        %v1437 = vunpack.c.l.b16 %v883
        %v1438 = vunpack.c.l.b16 %v885
        %v1439 = vunpack.c.l.b16 %v886
        %v1440 = vunpack.c.l.b16 %v888
        %v1441 = vunpack.c.l.b16 %v889
        %v1442 = vunpack.c.l.b16 %v891
        %v1443 = vunpack.c.l.b16 %v892
        %v1444 = vunpack.c.l.b16 %v894
        %v1445 = vunpack.c.l.b16 %v895
        %v1446 = vunpack.c.l.b16 %v897
        %v1447 = vunpack.c.l.b16 %v898
        %v1448 = vunpack.c.l.b16 %v900
        %v1449 = vunpack.c.l.b16 %v901
        %v1450 = vpack.c.b16 %v1419, %v1418
        %v1451 = vpack.c.b16 %v1421, %v1420
        %v1452 = vpack.c.b16 %v1423, %v1422
        %v1453 = vpack.c.b16 %v1425, %v1424
        %v1454 = vpack.c.b16 %v1427, %v1426
        %v1455 = vpack.c.b16 %v1429, %v1428
        %v1456 = vpack.c.b16 %v1431, %v1430
        %v1457 = vpack.c.b16 %v1433, %v1432
        %v1458 = vpack.c.b16 %v1435, %v1434
        %v1459 = vpack.c.b16 %v1437, %v1436
        %v1460 = vpack.c.b16 %v1439, %v1438
        %v1461 = vpack.c.b16 %v1441, %v1440
        %v1462 = vpack.c.b16 %v1443, %v1442
        %v1463 = vpack.c.b16 %v1445, %v1444
        %v1464 = vpack.c.b16 %v1447, %v1446
        %v1465 = vpack.c.b16 %v1449, %v1448
        %1466 = vrot.lane.b32.xlu0 %v1450, 12
        %v1467 = vpop.permute.xlu0 %1466
        %1468 = vrot.lane.b32.xlu0 %v1451, 12
        %v1469 = vpop.permute.xlu0 %1468
        %1470 = vrot.lane.b32.xlu0 %v1452, 12
        %v1471 = vpop.permute.xlu0 %1470
        %1472 = vrot.lane.b32.xlu0 %v1453, 12
        %v1473 = vpop.permute.xlu0 %1472
        %1474 = vrot.lane.b32.xlu0 %v1454, 12
        %v1475 = vpop.permute.xlu0 %1474
        %1476 = vrot.lane.b32.xlu0 %v1455, 12
        %v1477 = vpop.permute.xlu0 %1476
        %1478 = vrot.lane.b32.xlu0 %v1456, 12
        %v1479 = vpop.permute.xlu0 %1478
        %1480 = vrot.lane.b32.xlu0 %v1457, 12
        %v1481 = vpop.permute.xlu0 %1480
        %1482 = vrot.lane.b32.xlu0 %v1458, 12
        %v1483 = vpop.permute.xlu0 %1482
        %1484 = vrot.lane.b32.xlu0 %v1459, 12
        %v1485 = vpop.permute.xlu0 %1484
        %1486 = vrot.lane.b32.xlu0 %v1460, 12
        %v1487 = vpop.permute.xlu0 %1486
        %1488 = vrot.lane.b32.xlu0 %v1461, 12
        %v1489 = vpop.permute.xlu0 %1488
        %1490 = vrot.lane.b32.xlu0 %v1462, 12
        %v1491 = vpop.permute.xlu0 %1490
        %1492 = vrot.lane.b32.xlu0 %v1463, 12
        %v1493 = vpop.permute.xlu0 %1492
        %1494 = vrot.lane.b32.xlu0 %v1464, 12
        %v1495 = vpop.permute.xlu0 %1494
        %1496 = vrot.lane.b32.xlu0 %v1465, 12
        %v1497 = vpop.permute.xlu0 %1496
        %v1514 = vunpack.c.l.b16 %v857
        %v1515 = vunpack.c.l.b16 %v860
        %v1516 = vunpack.c.l.b16 %v863
        %v1517 = vunpack.c.l.b16 %v866
        %v1518 = vunpack.c.l.b16 %v869
        %v1519 = vunpack.c.l.b16 %v872
        %v1520 = vunpack.c.l.b16 %v875
        %v1521 = vunpack.c.l.b16 %v878
        %v1522 = vunpack.c.l.b16 %v881
        %v1523 = vunpack.c.l.b16 %v884
        %v1524 = vunpack.c.l.b16 %v887
        %v1525 = vunpack.c.l.b16 %v890
        %v1526 = vunpack.c.l.b16 %v893
        %v1527 = vunpack.c.l.b16 %v896
        %v1528 = vunpack.c.l.b16 %v899
        %v1529 = vunpack.c.l.b16 %v902
        %v1530 = vpack.c.b16 %v1514, %v1514
        %v1531 = vpack.c.b16 %v1515, %v1515
        %v1532 = vpack.c.b16 %v1516, %v1516
        %v1533 = vpack.c.b16 %v1517, %v1517
        %v1534 = vpack.c.b16 %v1518, %v1518
        %v1535 = vpack.c.b16 %v1519, %v1519
        %v1536 = vpack.c.b16 %v1520, %v1520
        %v1537 = vpack.c.b16 %v1521, %v1521
        %v1538 = vpack.c.b16 %v1522, %v1522
        %v1539 = vpack.c.b16 %v1523, %v1523
        %v1540 = vpack.c.b16 %v1524, %v1524
        %v1541 = vpack.c.b16 %v1525, %v1525
        %v1542 = vpack.c.b16 %v1526, %v1526
        %v1543 = vpack.c.b16 %v1527, %v1527
        %v1544 = vpack.c.b16 %v1528, %v1528
        %v1545 = vpack.c.b16 %v1529, %v1529
        %v1547 = vshrl.u32 %v1450, 16
        %v1549 = vshll.u32 %v1450, 16
        %v1551 = vrot.slane %v1549, 1
        %v1552 = vor.u32 %v1547, %v1551
        %v1554 = vshll.u32 %v1530, 16
        %v1556 = vrot.slane %v1554, 1
        %v1557 = vsel %vm1080, %v1552, %v1556
        %v1559 = vshrl.u32 %v1451, 16
        %v1561 = vshll.u32 %v1451, 16
        %v1563 = vrot.slane %v1561, 1
        %v1564 = vor.u32 %v1559, %v1563
        %v1566 = vshll.u32 %v1531, 16
        %v1568 = vrot.slane %v1566, 1
        %v1569 = vsel %vm1080, %v1564, %v1568
        %v1571 = vshrl.u32 %v1452, 16
        %v1573 = vshll.u32 %v1452, 16
        %v1575 = vrot.slane %v1573, 1
        %v1576 = vor.u32 %v1571, %v1575
        %v1578 = vshll.u32 %v1532, 16
        %v1580 = vrot.slane %v1578, 1
        %v1581 = vsel %vm1080, %v1576, %v1580
        %v1583 = vshrl.u32 %v1453, 16
        %v1585 = vshll.u32 %v1453, 16
        %v1587 = vrot.slane %v1585, 1
        %v1588 = vor.u32 %v1583, %v1587
        %v1590 = vshll.u32 %v1533, 16
        %v1592 = vrot.slane %v1590, 1
        %v1593 = vsel %vm1080, %v1588, %v1592
        %v1595 = vshrl.u32 %v1454, 16
        %v1597 = vshll.u32 %v1454, 16
        %v1599 = vrot.slane %v1597, 1
        %v1600 = vor.u32 %v1595, %v1599
        %v1602 = vshll.u32 %v1534, 16
        %v1604 = vrot.slane %v1602, 1
        %v1605 = vsel %vm1080, %v1600, %v1604
        %v1607 = vshrl.u32 %v1455, 16
        %v1609 = vshll.u32 %v1455, 16
        %v1611 = vrot.slane %v1609, 1
        %v1612 = vor.u32 %v1607, %v1611
        %v1614 = vshll.u32 %v1535, 16
        %v1616 = vrot.slane %v1614, 1
        %v1617 = vsel %vm1080, %v1612, %v1616
        %v1619 = vshrl.u32 %v1456, 16
        %v1621 = vshll.u32 %v1456, 16
        %v1623 = vrot.slane %v1621, 1
        %v1624 = vor.u32 %v1619, %v1623
        %v1626 = vshll.u32 %v1536, 16
        %v1628 = vrot.slane %v1626, 1
        %v1629 = vsel %vm1080, %v1624, %v1628
        %v1631 = vshrl.u32 %v1457, 16
        %v1633 = vshll.u32 %v1457, 16
        %v1635 = vrot.slane %v1633, 1
        %v1636 = vor.u32 %v1631, %v1635
        %v1638 = vshll.u32 %v1537, 16
        %v1640 = vrot.slane %v1638, 1
        %v1641 = vsel %vm1080, %v1636, %v1640
        %v1643 = vshrl.u32 %v1458, 16
        %v1645 = vshll.u32 %v1458, 16
        %v1647 = vrot.slane %v1645, 1
        %v1648 = vor.u32 %v1643, %v1647
        %v1650 = vshll.u32 %v1538, 16
        %v1652 = vrot.slane %v1650, 1
        %v1653 = vsel %vm1080, %v1648, %v1652
        %v1655 = vshrl.u32 %v1459, 16
        %v1657 = vshll.u32 %v1459, 16
        %v1659 = vrot.slane %v1657, 1
        %v1660 = vor.u32 %v1655, %v1659
        %v1662 = vshll.u32 %v1539, 16
        %v1664 = vrot.slane %v1662, 1
        %v1665 = vsel %vm1080, %v1660, %v1664
        %v1667 = vshrl.u32 %v1460, 16
        %v1669 = vshll.u32 %v1460, 16
        %v1671 = vrot.slane %v1669, 1
        %v1672 = vor.u32 %v1667, %v1671
        %v1674 = vshll.u32 %v1540, 16
        %v1676 = vrot.slane %v1674, 1
        %v1677 = vsel %vm1080, %v1672, %v1676
        %v1679 = vshrl.u32 %v1461, 16
        %v1681 = vshll.u32 %v1461, 16
        %v1683 = vrot.slane %v1681, 1
        %v1684 = vor.u32 %v1679, %v1683
        %v1686 = vshll.u32 %v1541, 16
        %v1688 = vrot.slane %v1686, 1
        %v1689 = vsel %vm1080, %v1684, %v1688
        %v1691 = vshrl.u32 %v1462, 16
        %v1693 = vshll.u32 %v1462, 16
        %v1695 = vrot.slane %v1693, 1
        %v1696 = vor.u32 %v1691, %v1695
        %v1698 = vshll.u32 %v1542, 16
        %v1700 = vrot.slane %v1698, 1
        %v1701 = vsel %vm1080, %v1696, %v1700
        %v1703 = vshrl.u32 %v1463, 16
        %v1705 = vshll.u32 %v1463, 16
        %v1707 = vrot.slane %v1705, 1
        %v1708 = vor.u32 %v1703, %v1707
        %v1710 = vshll.u32 %v1543, 16
        %v1712 = vrot.slane %v1710, 1
        %v1713 = vsel %vm1080, %v1708, %v1712
        %v1715 = vshrl.u32 %v1464, 16
        %v1717 = vshll.u32 %v1464, 16
        %v1719 = vrot.slane %v1717, 1
        %v1720 = vor.u32 %v1715, %v1719
        %v1722 = vshll.u32 %v1544, 16
        %v1724 = vrot.slane %v1722, 1
        %v1725 = vsel %vm1080, %v1720, %v1724
        %v1727 = vshrl.u32 %v1465, 16
        %v1729 = vshll.u32 %v1465, 16
        %v1731 = vrot.slane %v1729, 1
        %v1732 = vor.u32 %v1727, %v1731
        %v1734 = vshll.u32 %v1545, 16
        %v1736 = vrot.slane %v1734, 1
        %v1737 = vsel %vm1080, %v1732, %v1736
        %1738 = vrot.lane.b32.xlu0 %v1557, 16
        %v1739 = vpop.permute.xlu0 %1738
        %1740 = vrot.lane.b32.xlu0 %v1569, 16
        %v1741 = vpop.permute.xlu0 %1740
        %1742 = vrot.lane.b32.xlu0 %v1581, 16
        %v1743 = vpop.permute.xlu0 %1742
        %1744 = vrot.lane.b32.xlu0 %v1593, 16
        %v1745 = vpop.permute.xlu0 %1744
        %1746 = vrot.lane.b32.xlu0 %v1605, 16
        %v1747 = vpop.permute.xlu0 %1746
        %1748 = vrot.lane.b32.xlu0 %v1617, 16
        %v1749 = vpop.permute.xlu0 %1748
        %1750 = vrot.lane.b32.xlu0 %v1629, 16
        %v1751 = vpop.permute.xlu0 %1750
        %1752 = vrot.lane.b32.xlu0 %v1641, 16
        %v1753 = vpop.permute.xlu0 %1752
        %1754 = vrot.lane.b32.xlu0 %v1653, 16
        %v1755 = vpop.permute.xlu0 %1754
        %1756 = vrot.lane.b32.xlu0 %v1665, 16
        %v1757 = vpop.permute.xlu0 %1756
        %1758 = vrot.lane.b32.xlu0 %v1677, 16
        %v1759 = vpop.permute.xlu0 %1758
        %1760 = vrot.lane.b32.xlu0 %v1689, 16
        %v1761 = vpop.permute.xlu0 %1760
        %1762 = vrot.lane.b32.xlu0 %v1701, 16
        %v1763 = vpop.permute.xlu0 %1762
        %1764 = vrot.lane.b32.xlu0 %v1713, 16
        %v1765 = vpop.permute.xlu0 %1764
        %1766 = vrot.lane.b32.xlu0 %v1725, 16
        %v1767 = vpop.permute.xlu0 %1766
        %1768 = vrot.lane.b32.xlu0 %v1737, 16
        %v1769 = vpop.permute.xlu0 %1768
        %v1770 = vrot.slane %v1450, 1
        %v1771 = vrot.slane %v1530, 1
        %v1772 = vsel %vm1305, %v1770, %v1771
        %v1773 = vrot.slane %v1451, 1
        %v1774 = vrot.slane %v1531, 1
        %v1775 = vsel %vm1305, %v1773, %v1774
        %v1776 = vrot.slane %v1452, 1
        %v1777 = vrot.slane %v1532, 1
        %v1778 = vsel %vm1305, %v1776, %v1777
        %v1779 = vrot.slane %v1453, 1
        %v1780 = vrot.slane %v1533, 1
        %v1781 = vsel %vm1305, %v1779, %v1780
        %v1782 = vrot.slane %v1454, 1
        %v1783 = vrot.slane %v1534, 1
        %v1784 = vsel %vm1305, %v1782, %v1783
        %v1785 = vrot.slane %v1455, 1
        %v1786 = vrot.slane %v1535, 1
        %v1787 = vsel %vm1305, %v1785, %v1786
        %v1788 = vrot.slane %v1456, 1
        %v1789 = vrot.slane %v1536, 1
        %v1790 = vsel %vm1305, %v1788, %v1789
        %v1791 = vrot.slane %v1457, 1
        %v1792 = vrot.slane %v1537, 1
        %v1793 = vsel %vm1305, %v1791, %v1792
        %v1794 = vrot.slane %v1458, 1
        %v1795 = vrot.slane %v1538, 1
        %v1796 = vsel %vm1305, %v1794, %v1795
        %v1797 = vrot.slane %v1459, 1
        %v1798 = vrot.slane %v1539, 1
        %v1799 = vsel %vm1305, %v1797, %v1798
        %v1800 = vrot.slane %v1460, 1
        %v1801 = vrot.slane %v1540, 1
        %v1802 = vsel %vm1305, %v1800, %v1801
        %v1803 = vrot.slane %v1461, 1
        %v1804 = vrot.slane %v1541, 1
        %v1805 = vsel %vm1305, %v1803, %v1804
        %v1806 = vrot.slane %v1462, 1
        %v1807 = vrot.slane %v1542, 1
        %v1808 = vsel %vm1305, %v1806, %v1807
        %v1809 = vrot.slane %v1463, 1
        %v1810 = vrot.slane %v1543, 1
        %v1811 = vsel %vm1305, %v1809, %v1810
        %v1812 = vrot.slane %v1464, 1
        %v1813 = vrot.slane %v1544, 1
        %v1814 = vsel %vm1305, %v1812, %v1813
        %v1815 = vrot.slane %v1465, 1
        %v1816 = vrot.slane %v1545, 1
        %v1817 = vsel %vm1305, %v1815, %v1816
        %1818 = vrot.lane.b32.xlu0 %v1772, 20
        %v1819 = vpop.permute.xlu0 %1818
        %1820 = vrot.lane.b32.xlu0 %v1775, 20
        %v1821 = vpop.permute.xlu0 %1820
        %1822 = vrot.lane.b32.xlu0 %v1778, 20
        %v1823 = vpop.permute.xlu0 %1822
        %1824 = vrot.lane.b32.xlu0 %v1781, 20
        %v1825 = vpop.permute.xlu0 %1824
        %1826 = vrot.lane.b32.xlu0 %v1784, 20
        %v1827 = vpop.permute.xlu0 %1826
        %1828 = vrot.lane.b32.xlu0 %v1787, 20
        %v1829 = vpop.permute.xlu0 %1828
        %1830 = vrot.lane.b32.xlu0 %v1790, 20
        %v1831 = vpop.permute.xlu0 %1830
        %1832 = vrot.lane.b32.xlu0 %v1793, 20
        %v1833 = vpop.permute.xlu0 %1832
        %1834 = vrot.lane.b32.xlu0 %v1796, 20
        %v1835 = vpop.permute.xlu0 %1834
        %1836 = vrot.lane.b32.xlu0 %v1799, 20
        %v1837 = vpop.permute.xlu0 %1836
        %1838 = vrot.lane.b32.xlu0 %v1802, 20
        %v1839 = vpop.permute.xlu0 %1838
        %1840 = vrot.lane.b32.xlu0 %v1805, 20
        %v1841 = vpop.permute.xlu0 %1840
        %1842 = vrot.lane.b32.xlu0 %v1808, 20
        %v1843 = vpop.permute.xlu0 %1842
        %1844 = vrot.lane.b32.xlu0 %v1811, 20
        %v1845 = vpop.permute.xlu0 %1844
        %1846 = vrot.lane.b32.xlu0 %v1814, 20
        %v1847 = vpop.permute.xlu0 %1846
        %1848 = vrot.lane.b32.xlu0 %v1817, 20
        %v1849 = vpop.permute.xlu0 %1848
        %v1882 = vunpack.c.l.b16 %v904
        %v1883 = vunpack.c.l.b16 %v905
        %v1884 = vunpack.c.l.b16 %v907
        %v1885 = vunpack.c.l.b16 %v908
        %v1886 = vunpack.c.l.b16 %v910
        %v1887 = vunpack.c.l.b16 %v911
        %v1888 = vunpack.c.l.b16 %v913
        %v1889 = vunpack.c.l.b16 %v914
        %v1890 = vunpack.c.l.b16 %v916
        %v1891 = vunpack.c.l.b16 %v917
        %v1892 = vunpack.c.l.b16 %v919
        %v1893 = vunpack.c.l.b16 %v920
        %v1894 = vunpack.c.l.b16 %v922
        %v1895 = vunpack.c.l.b16 %v923
        %v1896 = vunpack.c.l.b16 %v925
        %v1897 = vunpack.c.l.b16 %v926
        %v1898 = vunpack.c.l.b16 %v928
        %v1899 = vunpack.c.l.b16 %v929
        %v1900 = vunpack.c.l.b16 %v931
        %v1901 = vunpack.c.l.b16 %v932
        %v1902 = vunpack.c.l.b16 %v934
        %v1903 = vunpack.c.l.b16 %v935
        %v1904 = vunpack.c.l.b16 %v937
        %v1905 = vunpack.c.l.b16 %v938
        %v1906 = vunpack.c.l.b16 %v940
        %v1907 = vunpack.c.l.b16 %v941
        %v1908 = vunpack.c.l.b16 %v943
        %v1909 = vunpack.c.l.b16 %v944
        %v1910 = vunpack.c.l.b16 %v946
        %v1911 = vunpack.c.l.b16 %v947
        %v1912 = vunpack.c.l.b16 %v949
        %v1913 = vunpack.c.l.b16 %v950
        %v1914 = vpack.c.b16 %v1883, %v1882
        %v1915 = vpack.c.b16 %v1885, %v1884
        %v1916 = vpack.c.b16 %v1887, %v1886
        %v1917 = vpack.c.b16 %v1889, %v1888
        %v1918 = vpack.c.b16 %v1891, %v1890
        %v1919 = vpack.c.b16 %v1893, %v1892
        %v1920 = vpack.c.b16 %v1895, %v1894
        %v1921 = vpack.c.b16 %v1897, %v1896
        %v1922 = vpack.c.b16 %v1899, %v1898
        %v1923 = vpack.c.b16 %v1901, %v1900
        %v1924 = vpack.c.b16 %v1903, %v1902
        %v1925 = vpack.c.b16 %v1905, %v1904
        %v1926 = vpack.c.b16 %v1907, %v1906
        %v1927 = vpack.c.b16 %v1909, %v1908
        %v1928 = vpack.c.b16 %v1911, %v1910
        %v1929 = vpack.c.b16 %v1913, %v1912
        %1930 = vrot.lane.b32.xlu0 %v1914, 24
        %v1931 = vpop.permute.xlu0 %1930
        %1932 = vrot.lane.b32.xlu0 %v1915, 24
        %v1933 = vpop.permute.xlu0 %1932
        %1934 = vrot.lane.b32.xlu0 %v1916, 24
        %v1935 = vpop.permute.xlu0 %1934
        %1936 = vrot.lane.b32.xlu0 %v1917, 24
        %v1937 = vpop.permute.xlu0 %1936
        %1938 = vrot.lane.b32.xlu0 %v1918, 24
        %v1939 = vpop.permute.xlu0 %1938
        %1940 = vrot.lane.b32.xlu0 %v1919, 24
        %v1941 = vpop.permute.xlu0 %1940
        %1942 = vrot.lane.b32.xlu0 %v1920, 24
        %v1943 = vpop.permute.xlu0 %1942
        %1944 = vrot.lane.b32.xlu0 %v1921, 24
        %v1945 = vpop.permute.xlu0 %1944
        %1946 = vrot.lane.b32.xlu0 %v1922, 24
        %v1947 = vpop.permute.xlu0 %1946
        %1948 = vrot.lane.b32.xlu0 %v1923, 24
        %v1949 = vpop.permute.xlu0 %1948
        %1950 = vrot.lane.b32.xlu0 %v1924, 24
        %v1951 = vpop.permute.xlu0 %1950
        %1952 = vrot.lane.b32.xlu0 %v1925, 24
        %v1953 = vpop.permute.xlu0 %1952
        %1954 = vrot.lane.b32.xlu0 %v1926, 24
        %v1955 = vpop.permute.xlu0 %1954
        %1956 = vrot.lane.b32.xlu0 %v1927, 24
        %v1957 = vpop.permute.xlu0 %1956
        %1958 = vrot.lane.b32.xlu0 %v1928, 24
        %v1959 = vpop.permute.xlu0 %1958
        %1960 = vrot.lane.b32.xlu0 %v1929, 24
        %v1961 = vpop.permute.xlu0 %1960
        %v1978 = vunpack.c.l.b16 %v906
        %v1979 = vunpack.c.l.b16 %v909
        %v1980 = vunpack.c.l.b16 %v912
        %v1981 = vunpack.c.l.b16 %v915
        %v1982 = vunpack.c.l.b16 %v918
        %v1983 = vunpack.c.l.b16 %v921
        %v1984 = vunpack.c.l.b16 %v924
        %v1985 = vunpack.c.l.b16 %v927
        %v1986 = vunpack.c.l.b16 %v930
        %v1987 = vunpack.c.l.b16 %v933
        %v1988 = vunpack.c.l.b16 %v936
        %v1989 = vunpack.c.l.b16 %v939
        %v1990 = vunpack.c.l.b16 %v942
        %v1991 = vunpack.c.l.b16 %v945
        %v1992 = vunpack.c.l.b16 %v948
        %v1993 = vunpack.c.l.b16 %v951
        %v1994 = vpack.c.b16 %v1978, %v1978
        %v1995 = vpack.c.b16 %v1979, %v1979
        %v1996 = vpack.c.b16 %v1980, %v1980
        %v1997 = vpack.c.b16 %v1981, %v1981
        %v1998 = vpack.c.b16 %v1982, %v1982
        %v1999 = vpack.c.b16 %v1983, %v1983
        %v2000 = vpack.c.b16 %v1984, %v1984
        %v2001 = vpack.c.b16 %v1985, %v1985
        %v2002 = vpack.c.b16 %v1986, %v1986
        %v2003 = vpack.c.b16 %v1987, %v1987
        %v2004 = vpack.c.b16 %v1988, %v1988
        %v2005 = vpack.c.b16 %v1989, %v1989
        %v2006 = vpack.c.b16 %v1990, %v1990
        %v2007 = vpack.c.b16 %v1991, %v1991
        %v2008 = vpack.c.b16 %v1992, %v1992
        %v2009 = vpack.c.b16 %v1993, %v1993
        %v2011 = vshrl.u32 %v1914, 16
        %v2013 = vshll.u32 %v1914, 16
        %v2015 = vrot.slane %v2013, 1
        %v2016 = vor.u32 %v2011, %v2015
        %v2018 = vshll.u32 %v1994, 16
        %v2020 = vrot.slane %v2018, 1
        %v2021 = vsel %vm1080, %v2016, %v2020
        %v2023 = vshrl.u32 %v1915, 16
        %v2025 = vshll.u32 %v1915, 16
        %v2027 = vrot.slane %v2025, 1
        %v2028 = vor.u32 %v2023, %v2027
        %v2030 = vshll.u32 %v1995, 16
        %v2032 = vrot.slane %v2030, 1
        %v2033 = vsel %vm1080, %v2028, %v2032
        %v2035 = vshrl.u32 %v1916, 16
        %v2037 = vshll.u32 %v1916, 16
        %v2039 = vrot.slane %v2037, 1
        %v2040 = vor.u32 %v2035, %v2039
        %v2042 = vshll.u32 %v1996, 16
        %v2044 = vrot.slane %v2042, 1
        %v2045 = vsel %vm1080, %v2040, %v2044
        %v2047 = vshrl.u32 %v1917, 16
        %v2049 = vshll.u32 %v1917, 16
        %v2051 = vrot.slane %v2049, 1
        %v2052 = vor.u32 %v2047, %v2051
        %v2054 = vshll.u32 %v1997, 16
        %v2056 = vrot.slane %v2054, 1
        %v2057 = vsel %vm1080, %v2052, %v2056
        %v2059 = vshrl.u32 %v1918, 16
        %v2061 = vshll.u32 %v1918, 16
        %v2063 = vrot.slane %v2061, 1
        %v2064 = vor.u32 %v2059, %v2063
        %v2066 = vshll.u32 %v1998, 16
        %v2068 = vrot.slane %v2066, 1
        %v2069 = vsel %vm1080, %v2064, %v2068
        %v2071 = vshrl.u32 %v1919, 16
        %v2073 = vshll.u32 %v1919, 16
        %v2075 = vrot.slane %v2073, 1
        %v2076 = vor.u32 %v2071, %v2075
        %v2078 = vshll.u32 %v1999, 16
        %v2080 = vrot.slane %v2078, 1
        %v2081 = vsel %vm1080, %v2076, %v2080
        %v2083 = vshrl.u32 %v1920, 16
        %v2085 = vshll.u32 %v1920, 16
        %v2087 = vrot.slane %v2085, 1
        %v2088 = vor.u32 %v2083, %v2087
        %v2090 = vshll.u32 %v2000, 16
        %v2092 = vrot.slane %v2090, 1
        %v2093 = vsel %vm1080, %v2088, %v2092
        %v2095 = vshrl.u32 %v1921, 16
        %v2097 = vshll.u32 %v1921, 16
        %v2099 = vrot.slane %v2097, 1
        %v2100 = vor.u32 %v2095, %v2099
        %v2102 = vshll.u32 %v2001, 16
        %v2104 = vrot.slane %v2102, 1
        %v2105 = vsel %vm1080, %v2100, %v2104
        %v2107 = vshrl.u32 %v1922, 16
        %v2109 = vshll.u32 %v1922, 16
        %v2111 = vrot.slane %v2109, 1
        %v2112 = vor.u32 %v2107, %v2111
        %v2114 = vshll.u32 %v2002, 16
        %v2116 = vrot.slane %v2114, 1
        %v2117 = vsel %vm1080, %v2112, %v2116
        %v2119 = vshrl.u32 %v1923, 16
        %v2121 = vshll.u32 %v1923, 16
        %v2123 = vrot.slane %v2121, 1
        %v2124 = vor.u32 %v2119, %v2123
        %v2126 = vshll.u32 %v2003, 16
        %v2128 = vrot.slane %v2126, 1
        %v2129 = vsel %vm1080, %v2124, %v2128
        %v2131 = vshrl.u32 %v1924, 16
        %v2133 = vshll.u32 %v1924, 16
        %v2135 = vrot.slane %v2133, 1
        %v2136 = vor.u32 %v2131, %v2135
        %v2138 = vshll.u32 %v2004, 16
        %v2140 = vrot.slane %v2138, 1
        %v2141 = vsel %vm1080, %v2136, %v2140
        %v2143 = vshrl.u32 %v1925, 16
        %v2145 = vshll.u32 %v1925, 16
        %v2147 = vrot.slane %v2145, 1
        %v2148 = vor.u32 %v2143, %v2147
        %v2150 = vshll.u32 %v2005, 16
        %v2152 = vrot.slane %v2150, 1
        %v2153 = vsel %vm1080, %v2148, %v2152
        %v2155 = vshrl.u32 %v1926, 16
        %v2157 = vshll.u32 %v1926, 16
        %v2159 = vrot.slane %v2157, 1
        %v2160 = vor.u32 %v2155, %v2159
        %v2162 = vshll.u32 %v2006, 16
        %v2164 = vrot.slane %v2162, 1
        %v2165 = vsel %vm1080, %v2160, %v2164
        %v2167 = vshrl.u32 %v1927, 16
        %v2169 = vshll.u32 %v1927, 16
        %v2171 = vrot.slane %v2169, 1
        %v2172 = vor.u32 %v2167, %v2171
        %v2174 = vshll.u32 %v2007, 16
        %v2176 = vrot.slane %v2174, 1
        %v2177 = vsel %vm1080, %v2172, %v2176
        %v2179 = vshrl.u32 %v1928, 16
        %v2181 = vshll.u32 %v1928, 16
        %v2183 = vrot.slane %v2181, 1
        %v2184 = vor.u32 %v2179, %v2183
        %v2186 = vshll.u32 %v2008, 16
        %v2188 = vrot.slane %v2186, 1
        %v2189 = vsel %vm1080, %v2184, %v2188
        %v2191 = vshrl.u32 %v1929, 16
        %v2193 = vshll.u32 %v1929, 16
        %v2195 = vrot.slane %v2193, 1
        %v2196 = vor.u32 %v2191, %v2195
        %v2198 = vshll.u32 %v2009, 16
        %v2200 = vrot.slane %v2198, 1
        %v2201 = vsel %vm1080, %v2196, %v2200
        %2202 = vrot.lane.b32.xlu0 %v2021, 28
        %v2203 = vpop.permute.xlu0 %2202
        %2204 = vrot.lane.b32.xlu0 %v2033, 28
        %v2205 = vpop.permute.xlu0 %2204
        %2206 = vrot.lane.b32.xlu0 %v2045, 28
        %v2207 = vpop.permute.xlu0 %2206
        %2208 = vrot.lane.b32.xlu0 %v2057, 28
        %v2209 = vpop.permute.xlu0 %2208
        %2210 = vrot.lane.b32.xlu0 %v2069, 28
        %v2211 = vpop.permute.xlu0 %2210
        %2212 = vrot.lane.b32.xlu0 %v2081, 28
        %v2213 = vpop.permute.xlu0 %2212
        %2214 = vrot.lane.b32.xlu0 %v2093, 28
        %v2215 = vpop.permute.xlu0 %2214
        %2216 = vrot.lane.b32.xlu0 %v2105, 28
        %v2217 = vpop.permute.xlu0 %2216
        %2218 = vrot.lane.b32.xlu0 %v2117, 28
        %v2219 = vpop.permute.xlu0 %2218
        %2220 = vrot.lane.b32.xlu0 %v2129, 28
        %v2221 = vpop.permute.xlu0 %2220
        %2222 = vrot.lane.b32.xlu0 %v2141, 28
        %v2223 = vpop.permute.xlu0 %2222
        %2224 = vrot.lane.b32.xlu0 %v2153, 28
        %v2225 = vpop.permute.xlu0 %2224
        %2226 = vrot.lane.b32.xlu0 %v2165, 28
        %v2227 = vpop.permute.xlu0 %2226
        %2228 = vrot.lane.b32.xlu0 %v2177, 28
        %v2229 = vpop.permute.xlu0 %2228
        %2230 = vrot.lane.b32.xlu0 %v2189, 28
        %v2231 = vpop.permute.xlu0 %2230
        %2232 = vrot.lane.b32.xlu0 %v2201, 28
        %v2233 = vpop.permute.xlu0 %2232
        %v2234 = vrot.slane %v1914, 1
        %v2235 = vrot.slane %v1994, 1
        %v2236 = vsel %vm1305, %v2234, %v2235
        %v2237 = vrot.slane %v1915, 1
        %v2238 = vrot.slane %v1995, 1
        %v2239 = vsel %vm1305, %v2237, %v2238
        %v2240 = vrot.slane %v1916, 1
        %v2241 = vrot.slane %v1996, 1
        %v2242 = vsel %vm1305, %v2240, %v2241
        %v2243 = vrot.slane %v1917, 1
        %v2244 = vrot.slane %v1997, 1
        %v2245 = vsel %vm1305, %v2243, %v2244
        %v2246 = vrot.slane %v1918, 1
        %v2247 = vrot.slane %v1998, 1
        %v2248 = vsel %vm1305, %v2246, %v2247
        %v2249 = vrot.slane %v1919, 1
        %v2250 = vrot.slane %v1999, 1
        %v2251 = vsel %vm1305, %v2249, %v2250
        %v2252 = vrot.slane %v1920, 1
        %v2253 = vrot.slane %v2000, 1
        %v2254 = vsel %vm1305, %v2252, %v2253
        %v2255 = vrot.slane %v1921, 1
        %v2256 = vrot.slane %v2001, 1
        %v2257 = vsel %vm1305, %v2255, %v2256
        %v2258 = vrot.slane %v1922, 1
        %v2259 = vrot.slane %v2002, 1
        %v2260 = vsel %vm1305, %v2258, %v2259
        %v2261 = vrot.slane %v1923, 1
        %v2262 = vrot.slane %v2003, 1
        %v2263 = vsel %vm1305, %v2261, %v2262
        %v2264 = vrot.slane %v1924, 1
        %v2265 = vrot.slane %v2004, 1
        %v2266 = vsel %vm1305, %v2264, %v2265
        %v2267 = vrot.slane %v1925, 1
        %v2268 = vrot.slane %v2005, 1
        %v2269 = vsel %vm1305, %v2267, %v2268
        %v2270 = vrot.slane %v1926, 1
        %v2271 = vrot.slane %v2006, 1
        %v2272 = vsel %vm1305, %v2270, %v2271
        %v2273 = vrot.slane %v1927, 1
        %v2274 = vrot.slane %v2007, 1
        %v2275 = vsel %vm1305, %v2273, %v2274
        %v2276 = vrot.slane %v1928, 1
        %v2277 = vrot.slane %v2008, 1
        %v2278 = vsel %vm1305, %v2276, %v2277
        %v2279 = vrot.slane %v1929, 1
        %v2280 = vrot.slane %v2009, 1
        %v2281 = vsel %vm1305, %v2279, %v2280
        %2282 = vrot.lane.b32.xlu0 %v2236, 32
        %v2283 = vpop.permute.xlu0 %2282
        %2284 = vrot.lane.b32.xlu0 %v2239, 32
        %v2285 = vpop.permute.xlu0 %2284
        %2286 = vrot.lane.b32.xlu0 %v2242, 32
        %v2287 = vpop.permute.xlu0 %2286
        %2288 = vrot.lane.b32.xlu0 %v2245, 32
        %v2289 = vpop.permute.xlu0 %2288
        %2290 = vrot.lane.b32.xlu0 %v2248, 32
        %v2291 = vpop.permute.xlu0 %2290
        %2292 = vrot.lane.b32.xlu0 %v2251, 32
        %v2293 = vpop.permute.xlu0 %2292
        %2294 = vrot.lane.b32.xlu0 %v2254, 32
        %v2295 = vpop.permute.xlu0 %2294
        %2296 = vrot.lane.b32.xlu0 %v2257, 32
        %v2297 = vpop.permute.xlu0 %2296
        %2298 = vrot.lane.b32.xlu0 %v2260, 32
        %v2299 = vpop.permute.xlu0 %2298
        %2300 = vrot.lane.b32.xlu0 %v2263, 32
        %v2301 = vpop.permute.xlu0 %2300
        %2302 = vrot.lane.b32.xlu0 %v2266, 32
        %v2303 = vpop.permute.xlu0 %2302
        %2304 = vrot.lane.b32.xlu0 %v2269, 32
        %v2305 = vpop.permute.xlu0 %2304
        %2306 = vrot.lane.b32.xlu0 %v2272, 32
        %v2307 = vpop.permute.xlu0 %2306
        %2308 = vrot.lane.b32.xlu0 %v2275, 32
        %v2309 = vpop.permute.xlu0 %2308
        %2310 = vrot.lane.b32.xlu0 %v2278, 32
        %v2311 = vpop.permute.xlu0 %2310
        %2312 = vrot.lane.b32.xlu0 %v2281, 32
        %v2313 = vpop.permute.xlu0 %2312
        %vm2314 = vcmask 31744
        %v2316 = vsel %vm2314, %v1016, %v1274
        %v2318 = vsel %vm2314, %v1017, %v1276
        %v2320 = vsel %vm2314, %v1018, %v1278
        %v2322 = vsel %vm2314, %v1019, %v1280
        %v2324 = vsel %vm2314, %v1020, %v1282
        %v2326 = vsel %vm2314, %v1021, %v1284
        %v2328 = vsel %vm2314, %v1022, %v1286
        %v2330 = vsel %vm2314, %v1023, %v1288
        %v2332 = vsel %vm2314, %v1024, %v1290
        %v2334 = vsel %vm2314, %v1025, %v1292
        %v2336 = vsel %vm2314, %v1026, %v1294
        %v2338 = vsel %vm2314, %v1027, %v1296
        %v2340 = vsel %vm2314, %v1028, %v1298
        %v2342 = vsel %vm2314, %v1029, %v1300
        %v2344 = vsel %vm2314, %v1030, %v1302
        %v2346 = vsel %vm2314, %v1031, %v1304
        %vm2347 = vcmask 64512
        %v2349 = vsel %vm2347, %v2316, %v1355
        %v2351 = vsel %vm2347, %v2318, %v1357
        %v2353 = vsel %vm2347, %v2320, %v1359
        %v2355 = vsel %vm2347, %v2322, %v1361
        %v2357 = vsel %vm2347, %v2324, %v1363
        %v2359 = vsel %vm2347, %v2326, %v1365
        %v2361 = vsel %vm2347, %v2328, %v1367
        %v2363 = vsel %vm2347, %v2330, %v1369
        %v2365 = vsel %vm2347, %v2332, %v1371
        %v2367 = vsel %vm2347, %v2334, %v1373
        %v2369 = vsel %vm2347, %v2336, %v1375
        %v2371 = vsel %vm2347, %v2338, %v1377
        %v2373 = vsel %vm2347, %v2340, %v1379
        %v2375 = vsel %vm2347, %v2342, %v1381
        %v2377 = vsel %vm2347, %v2344, %v1383
        %v2379 = vsel %vm2347, %v2346, %v1385
        %vm2380 = vcmask 97280
        %v2382 = vsel %vm2380, %v2349, %v1467
        %v2384 = vsel %vm2380, %v2351, %v1469
        %v2386 = vsel %vm2380, %v2353, %v1471
        %v2388 = vsel %vm2380, %v2355, %v1473
        %v2390 = vsel %vm2380, %v2357, %v1475
        %v2392 = vsel %vm2380, %v2359, %v1477
        %v2394 = vsel %vm2380, %v2361, %v1479
        %v2396 = vsel %vm2380, %v2363, %v1481
        %v2398 = vsel %vm2380, %v2365, %v1483
        %v2400 = vsel %vm2380, %v2367, %v1485
        %v2402 = vsel %vm2380, %v2369, %v1487
        %v2404 = vsel %vm2380, %v2371, %v1489
        %v2406 = vsel %vm2380, %v2373, %v1491
        %v2408 = vsel %vm2380, %v2375, %v1493
        %v2410 = vsel %vm2380, %v2377, %v1495
        %v2412 = vsel %vm2380, %v2379, %v1497
        %vm2413 = vcmask 130048
        %v2415 = vsel %vm2413, %v2382, %v1739
        %v2417 = vsel %vm2413, %v2384, %v1741
        %v2419 = vsel %vm2413, %v2386, %v1743
        %v2421 = vsel %vm2413, %v2388, %v1745
        %v2423 = vsel %vm2413, %v2390, %v1747
        %v2425 = vsel %vm2413, %v2392, %v1749
        %v2427 = vsel %vm2413, %v2394, %v1751
        %v2429 = vsel %vm2413, %v2396, %v1753
        %v2431 = vsel %vm2413, %v2398, %v1755
        %v2433 = vsel %vm2413, %v2400, %v1757
        %v2435 = vsel %vm2413, %v2402, %v1759
        %v2437 = vsel %vm2413, %v2404, %v1761
        %v2439 = vsel %vm2413, %v2406, %v1763
        %v2441 = vsel %vm2413, %v2408, %v1765
        %v2443 = vsel %vm2413, %v2410, %v1767
        %v2445 = vsel %vm2413, %v2412, %v1769
        %vm2446 = vcmask 162816
        %v2448 = vsel %vm2446, %v2415, %v1819
        %v2450 = vsel %vm2446, %v2417, %v1821
        %v2452 = vsel %vm2446, %v2419, %v1823
        %v2454 = vsel %vm2446, %v2421, %v1825
        %v2456 = vsel %vm2446, %v2423, %v1827
        %v2458 = vsel %vm2446, %v2425, %v1829
        %v2460 = vsel %vm2446, %v2427, %v1831
        %v2462 = vsel %vm2446, %v2429, %v1833
        %v2464 = vsel %vm2446, %v2431, %v1835
        %v2466 = vsel %vm2446, %v2433, %v1837
        %v2468 = vsel %vm2446, %v2435, %v1839
        %v2470 = vsel %vm2446, %v2437, %v1841
        %v2472 = vsel %vm2446, %v2439, %v1843
        %v2474 = vsel %vm2446, %v2441, %v1845
        %v2476 = vsel %vm2446, %v2443, %v1847
        %v2478 = vsel %vm2446, %v2445, %v1849
        %vm2479 = vcmask 195584
        %v2481 = vsel %vm2479, %v2448, %v1931
        %v2483 = vsel %vm2479, %v2450, %v1933
        %v2485 = vsel %vm2479, %v2452, %v1935
        %v2487 = vsel %vm2479, %v2454, %v1937
        %v2489 = vsel %vm2479, %v2456, %v1939
        %v2491 = vsel %vm2479, %v2458, %v1941
        %v2493 = vsel %vm2479, %v2460, %v1943
        %v2495 = vsel %vm2479, %v2462, %v1945
        %v2497 = vsel %vm2479, %v2464, %v1947
        %v2499 = vsel %vm2479, %v2466, %v1949
        %v2501 = vsel %vm2479, %v2468, %v1951
        %v2503 = vsel %vm2479, %v2470, %v1953
        %v2505 = vsel %vm2479, %v2472, %v1955
        %v2507 = vsel %vm2479, %v2474, %v1957
        %v2509 = vsel %vm2479, %v2476, %v1959
        %v2511 = vsel %vm2479, %v2478, %v1961
        %vm2512 = vcmask 228352
        %v2514 = vsel %vm2512, %v2481, %v2203
        %v2516 = vsel %vm2512, %v2483, %v2205
        %v2518 = vsel %vm2512, %v2485, %v2207
        %v2520 = vsel %vm2512, %v2487, %v2209
        %v2522 = vsel %vm2512, %v2489, %v2211
        %v2524 = vsel %vm2512, %v2491, %v2213
        %v2526 = vsel %vm2512, %v2493, %v2215
        %v2528 = vsel %vm2512, %v2495, %v2217
        %v2530 = vsel %vm2512, %v2497, %v2219
        %v2532 = vsel %vm2512, %v2499, %v2221
        %v2534 = vsel %vm2512, %v2501, %v2223
        %v2536 = vsel %vm2512, %v2503, %v2225
        %v2538 = vsel %vm2512, %v2505, %v2227
        %v2540 = vsel %vm2512, %v2507, %v2229
        %v2542 = vsel %vm2512, %v2509, %v2231
        %v2544 = vsel %vm2512, %v2511, %v2233
        %vm2545 = vcmask 261120
        %v2547 = vsel %vm2545, %v2514, %v2283
        %v2549 = vsel %vm2545, %v2516, %v2285
        %v2551 = vsel %vm2545, %v2518, %v2287
        %v2553 = vsel %vm2545, %v2520, %v2289
        %v2555 = vsel %vm2545, %v2522, %v2291
        %v2557 = vsel %vm2545, %v2524, %v2293
        %v2559 = vsel %vm2545, %v2526, %v2295
        %v2561 = vsel %vm2545, %v2528, %v2297
        %v2563 = vsel %vm2545, %v2530, %v2299
        %v2565 = vsel %vm2545, %v2532, %v2301
        %v2567 = vsel %vm2545, %v2534, %v2303
        %v2569 = vsel %vm2545, %v2536, %v2305
        %v2571 = vsel %vm2545, %v2538, %v2307
        %v2573 = vsel %vm2545, %v2540, %v2309
        %v2575 = vsel %vm2545, %v2542, %v2311
        %v2577 = vsel %vm2545, %v2544, %v2313
        %v2578 = vld [vmem:[#allocation6] sm:$0xf]
        %v2579 = vld [vmem:[#allocation6 + $0x4] sm:$0xf]
        %v2580 = vld [vmem:[#allocation6 + $0x8] sm:$0xf]
        %v2581 = vld [vmem:[#allocation6 + $0xc] sm:$0xf]
        %v2582 = vld [vmem:[#allocation6 + $0x10] sm:$0x3]
        %v2588 = vunpack.c.l.b16 %v2578
        %v2589 = vunpack.c.l.b16 %v2579
        %v2590 = vunpack.c.l.b16 %v2580
        %v2591 = vunpack.c.l.b16 %v2581
        %v2592 = vunpack.c.l.b16 %v2582
        %v2593 = vpack.c.b16 %v2589, %v2588
        %v2594 = vpack.c.b16 %v2591, %v2590
        %v2595 = vpack.c.b16 %v2592, %v2592
        %vm2598 = vcmask 293888
        %v2599 = vsel %vm2598, %v2547, 0
        %v2601 = vsel %vm2598, %v2549, 0
        %v2603 = vsel %vm2598, %v2551, 0
        %v2605 = vsel %vm2598, %v2553, 0
        %v2607 = vsel %vm2598, %v2555, 0
        %v2609 = vsel %vm2598, %v2557, 0
        %v2611 = vsel %vm2598, %v2559, 0
        %v2613 = vsel %vm2598, %v2561, 0
        %v2615 = vsel %vm2598, %v2563, 0
        %v2617 = vsel %vm2598, %v2565, 0
        %v2619 = vsel %vm2598, %v2567, 0
        %v2621 = vsel %vm2598, %v2569, 0
        %v2623 = vsel %vm2598, %v2571, 0
        %v2625 = vsel %vm2598, %v2573, 0
        %v2627 = vsel %vm2598, %v2575, 0
        %v2629 = vsel %vm2598, %v2577, 0
        %vm2631 = vcmask 1041408
        %v2633 = vsel %vm2631, %v2595, 0
        %2635 = vmatprep.subr.bf16.mxu0 0
        %2636 = vmatpush1.bf16.msra.mxu0 %v2593
        %2637 = vmatprep.subr.bf16.mxu0 0
        %2638 = vmatpush1.bf16.msra.mxu0 %v2594
        %2639 = vmatprep.subr.bf16.mxu0 0
        %2640 = vmatpush1.bf16.msra.mxu0 %v2633
        %2641 = vmatprep.subr.bf16.mxu0 0
        %2642 = vmatpush1.bf16.msra.mxu0 0
        %2643 = vmatprep.subr.bf16.mxu0 0
        %2644 = vmatpush1.bf16.msra.mxu0 0
        %2645 = vmatprep.subr.bf16.mxu0 0
        %2646 = vmatpush1.bf16.msra.mxu0 0
        %2647 = vmatprep.subr.bf16.mxu0 0
        %2648 = vmatpush1.bf16.msra.mxu0 0
        %2649 = vmatprep.subr.bf16.mxu0 0
        %2650 = vmatpush1.bf16.msra.mxu0 0
        %2651 = vmatprep.subr.bf16.mxu0 0
        %2652 = vmatpush1.bf16.msra.mxu0 0
        %2653 = vmatprep.subr.bf16.mxu0 0
        %2654 = vmatpush1.bf16.msra.mxu0 0
        %2655 = vmatprep.subr.bf16.mxu0 0
        %2656 = vmatpush1.bf16.msra.mxu0 0
        %2657 = vmatprep.subr.bf16.mxu0 0
        %2658 = vmatpush1.bf16.msra.mxu0 0
        %2659 = vmatprep.subr.bf16.mxu0 0
        %2660 = vmatpush1.bf16.msra.mxu0 0
        %2661 = vmatprep.subr.bf16.mxu0 0
        %2662 = vmatpush1.bf16.msra.mxu0 0
        %2663 = vmatprep.subr.bf16.mxu0 0
        %2664 = vmatpush1.bf16.msra.mxu0 0
        %2665 = vmatprep.subr.bf16.mxu0 0
        %2666 = vmatpush1.bf16.msra.mxu0 0
        %2667 = vmatprep.mubr.bf16.mxu0 0
        %2668 = vmatmul.mubr.bf16.gmra.mrb[0].mxu0 %v2599
        %v2669 = vpop.f32.mrb[0].mxu0
        %v2670 = vadd.f32 0.0, %v2669
        %v2671 = vpop.f32.mrb[0].mxu0
        %v2672 = vpop.f32.mrb[0].mxu0
        %v2673 = vadd.f32 0.0, %v2672
        %v2674 = vpop.f32.mrb[0].mxu0
        %2675 = vmatprep.mubr.bf16.mxu0 0
        %2676 = vmatmul.mubr.bf16.gmra.mrb[0].mxu0 %v2601
        %v2677 = vpop.f32.mrb[0].mxu0
        %v2678 = vadd.f32 0.0, %v2677
        %v2679 = vpop.f32.mrb[0].mxu0
        %v2680 = vpop.f32.mrb[0].mxu0
        %v2681 = vadd.f32 0.0, %v2680
        %v2682 = vpop.f32.mrb[0].mxu0
        %2683 = vmatprep.mubr.bf16.mxu0 0
        %2684 = vmatmul.mubr.bf16.gmra.mrb[0].mxu0 %v2603
        %v2685 = vpop.f32.mrb[0].mxu0
        %v2686 = vadd.f32 0.0, %v2685
        %v2687 = vpop.f32.mrb[0].mxu0
        %v2688 = vpop.f32.mrb[0].mxu0
        %v2689 = vadd.f32 0.0, %v2688
        %v2690 = vpop.f32.mrb[0].mxu0
        %2691 = vmatprep.mubr.bf16.mxu0 0
        %2692 = vmatmul.mubr.bf16.gmra.mrb[0].mxu0 %v2605
        %v2693 = vpop.f32.mrb[0].mxu0
        %v2694 = vadd.f32 0.0, %v2693
        %v2695 = vpop.f32.mrb[0].mxu0
        %v2696 = vpop.f32.mrb[0].mxu0
        %v2697 = vadd.f32 0.0, %v2696
        %v2698 = vpop.f32.mrb[0].mxu0
        %2699 = vmatprep.mubr.bf16.mxu0 0
        %2700 = vmatmul.mubr.bf16.gmra.mrb[0].mxu0 %v2607
        %v2701 = vpop.f32.mrb[0].mxu0
        %v2702 = vadd.f32 0.0, %v2701
        %v2703 = vpop.f32.mrb[0].mxu0
        %v2704 = vpop.f32.mrb[0].mxu0
        %v2705 = vadd.f32 0.0, %v2704
        %v2706 = vpop.f32.mrb[0].mxu0
        %2707 = vmatprep.mubr.bf16.mxu0 0
        %2708 = vmatmul.mubr.bf16.gmra.mrb[0].mxu0 %v2609
        %v2709 = vpop.f32.mrb[0].mxu0
        %v2710 = vadd.f32 0.0, %v2709
        %v2711 = vpop.f32.mrb[0].mxu0
        %v2712 = vpop.f32.mrb[0].mxu0
        %v2713 = vadd.f32 0.0, %v2712
        %v2714 = vpop.f32.mrb[0].mxu0
        %2715 = vmatprep.mubr.bf16.mxu0 0
        %2716 = vmatmul.mubr.bf16.gmra.mrb[0].mxu0 %v2611
        %v2717 = vpop.f32.mrb[0].mxu0
        %v2718 = vadd.f32 0.0, %v2717
        %v2719 = vpop.f32.mrb[0].mxu0
        %v2720 = vpop.f32.mrb[0].mxu0
        %v2721 = vadd.f32 0.0, %v2720
        %v2722 = vpop.f32.mrb[0].mxu0
        %2723 = vmatprep.mubr.bf16.mxu0 0
        %2724 = vmatmul.mubr.bf16.gmra.mrb[0].mxu0 %v2613
        %v2725 = vpop.f32.mrb[0].mxu0
        %v2726 = vadd.f32 0.0, %v2725
        %v2727 = vpop.f32.mrb[0].mxu0
        %v2728 = vpop.f32.mrb[0].mxu0
        %v2729 = vadd.f32 0.0, %v2728
        %v2730 = vpop.f32.mrb[0].mxu0
        %2731 = vmatprep.mubr.bf16.mxu0 0
        %2732 = vmatmul.mubr.bf16.gmra.mrb[0].mxu0 %v2615
        %v2733 = vpop.f32.mrb[0].mxu0
        %v2734 = vadd.f32 0.0, %v2733
        %v2735 = vpop.f32.mrb[0].mxu0
        %v2736 = vpop.f32.mrb[0].mxu0
        %v2737 = vadd.f32 0.0, %v2736
        %v2738 = vpop.f32.mrb[0].mxu0
        %2739 = vmatprep.mubr.bf16.mxu0 0
        %2740 = vmatmul.mubr.bf16.gmra.mrb[0].mxu0 %v2617
        %v2741 = vpop.f32.mrb[0].mxu0
        %v2742 = vadd.f32 0.0, %v2741
        %v2743 = vpop.f32.mrb[0].mxu0
        %v2744 = vpop.f32.mrb[0].mxu0
        %v2745 = vadd.f32 0.0, %v2744
        %v2746 = vpop.f32.mrb[0].mxu0
        %2747 = vmatprep.mubr.bf16.mxu0 0
        %2748 = vmatmul.mubr.bf16.gmra.mrb[0].mxu0 %v2619
        %v2749 = vpop.f32.mrb[0].mxu0
        %v2750 = vadd.f32 0.0, %v2749
        %v2751 = vpop.f32.mrb[0].mxu0
        %v2752 = vpop.f32.mrb[0].mxu0
        %v2753 = vadd.f32 0.0, %v2752
        %v2754 = vpop.f32.mrb[0].mxu0
        %2755 = vmatprep.mubr.bf16.mxu0 0
        %2756 = vmatmul.mubr.bf16.gmra.mrb[0].mxu0 %v2621
        %v2757 = vpop.f32.mrb[0].mxu0
        %v2758 = vadd.f32 0.0, %v2757
        %v2759 = vpop.f32.mrb[0].mxu0
        %v2760 = vpop.f32.mrb[0].mxu0
        %v2761 = vadd.f32 0.0, %v2760
        %v2762 = vpop.f32.mrb[0].mxu0
        %2763 = vmatprep.mubr.bf16.mxu0 0
        %2764 = vmatmul.mubr.bf16.gmra.mrb[0].mxu0 %v2623
        %v2765 = vpop.f32.mrb[0].mxu0
        %v2766 = vadd.f32 0.0, %v2765
        %v2767 = vpop.f32.mrb[0].mxu0
        %v2768 = vpop.f32.mrb[0].mxu0
        %v2769 = vadd.f32 0.0, %v2768
        %v2770 = vpop.f32.mrb[0].mxu0
        %2771 = vmatprep.mubr.bf16.mxu0 0
        %2772 = vmatmul.mubr.bf16.gmra.mrb[0].mxu0 %v2625
        %v2773 = vpop.f32.mrb[0].mxu0
        %v2774 = vadd.f32 0.0, %v2773
        %v2775 = vpop.f32.mrb[0].mxu0
        %v2776 = vpop.f32.mrb[0].mxu0
        %v2777 = vadd.f32 0.0, %v2776
        %v2778 = vpop.f32.mrb[0].mxu0
        %2779 = vmatprep.mubr.bf16.mxu0 0
        %2780 = vmatmul.mubr.bf16.gmra.mrb[0].mxu0 %v2627
        %v2781 = vpop.f32.mrb[0].mxu0
        %v2782 = vadd.f32 0.0, %v2781
        %v2783 = vpop.f32.mrb[0].mxu0
        %v2784 = vpop.f32.mrb[0].mxu0
        %v2785 = vadd.f32 0.0, %v2784
        %v2786 = vpop.f32.mrb[0].mxu0
        %2787 = vmatprep.mubr.bf16.mxu0 0
        %2788 = vmatmul.mubr.bf16.gmra.mrb[0].mxu0 %v2629
        %v2789 = vpop.f32.mrb[0].mxu0
        %v2790 = vadd.f32 0.0, %v2789
        %v2791 = vpop.f32.mrb[0].mxu0
        %v2792 = vpop.f32.mrb[0].mxu0
        %v2793 = vadd.f32 0.0, %v2792
        %v2794 = vpop.f32.mrb[0].mxu0
        %2795 = vdwg.mxu0
        %v2796 = vpack.c.bf16 %v2673, %v2670
        %v2797 = vpack.c.bf16 %v2681, %v2678
        %v2798 = vpack.c.bf16 %v2689, %v2686
        %v2799 = vpack.c.bf16 %v2697, %v2694
        %v2800 = vpack.c.bf16 %v2705, %v2702
        %v2801 = vpack.c.bf16 %v2713, %v2710
        %v2802 = vpack.c.bf16 %v2721, %v2718
        %v2803 = vpack.c.bf16 %v2729, %v2726
        %v2804 = vpack.c.bf16 %v2737, %v2734
        %v2805 = vpack.c.bf16 %v2745, %v2742
        %v2806 = vpack.c.bf16 %v2753, %v2750
        %v2807 = vpack.c.bf16 %v2761, %v2758
        %v2808 = vpack.c.bf16 %v2769, %v2766
        %v2809 = vpack.c.bf16 %v2777, %v2774
        %v2810 = vpack.c.bf16 %v2785, %v2782
        %v2811 = vpack.c.bf16 %v2793, %v2790
        %v2828 = vunpack.c.l.b16 %v2796
        %v2829 = vunpack.c.h.b16 %v2796
        %v2830 = vunpack.c.l.b16 %v2797
        %v2831 = vunpack.c.h.b16 %v2797
        %v2832 = vunpack.c.l.b16 %v2798
        %v2833 = vunpack.c.h.b16 %v2798
        %v2834 = vunpack.c.l.b16 %v2799
        %v2835 = vunpack.c.h.b16 %v2799
        %v2836 = vunpack.c.l.b16 %v2800
        %v2837 = vunpack.c.h.b16 %v2800
        %v2838 = vunpack.c.l.b16 %v2801
        %v2839 = vunpack.c.h.b16 %v2801
        %v2840 = vunpack.c.l.b16 %v2802
        %v2841 = vunpack.c.h.b16 %v2802
        %v2842 = vunpack.c.l.b16 %v2803
        %v2843 = vunpack.c.h.b16 %v2803
        %v2844 = vunpack.c.l.b16 %v2804
        %v2845 = vunpack.c.h.b16 %v2804
        %v2846 = vunpack.c.l.b16 %v2805
        %v2847 = vunpack.c.h.b16 %v2805
        %v2848 = vunpack.c.l.b16 %v2806
        %v2849 = vunpack.c.h.b16 %v2806
        %v2850 = vunpack.c.l.b16 %v2807
        %v2851 = vunpack.c.h.b16 %v2807
        %v2852 = vunpack.c.l.b16 %v2808
        %v2853 = vunpack.c.h.b16 %v2808
        %v2854 = vunpack.c.l.b16 %v2809
        %v2855 = vunpack.c.h.b16 %v2809
        %v2856 = vunpack.c.l.b16 %v2810
        %v2857 = vunpack.c.h.b16 %v2810
        %v2858 = vunpack.c.l.b16 %v2811
        %v2859 = vunpack.c.h.b16 %v2811
        %v2860 = vpack.c.b16 %v2828, %v2828
        %v2861 = vpack.c.b16 %v2829, %v2829
        %v2862 = vpack.c.b16 %v2830, %v2830
        %v2863 = vpack.c.b16 %v2831, %v2831
        %v2864 = vpack.c.b16 %v2832, %v2832
        %v2865 = vpack.c.b16 %v2833, %v2833
        %v2866 = vpack.c.b16 %v2834, %v2834
        %v2867 = vpack.c.b16 %v2835, %v2835
        %v2868 = vpack.c.b16 %v2836, %v2836
        %v2869 = vpack.c.b16 %v2837, %v2837
        %v2870 = vpack.c.b16 %v2838, %v2838
        %v2871 = vpack.c.b16 %v2839, %v2839
        %v2872 = vpack.c.b16 %v2840, %v2840
        %v2873 = vpack.c.b16 %v2841, %v2841
        %v2874 = vpack.c.b16 %v2842, %v2842
        %v2875 = vpack.c.b16 %v2843, %v2843
        %v2876 = vpack.c.b16 %v2844, %v2844
        %v2877 = vpack.c.b16 %v2845, %v2845
        %v2878 = vpack.c.b16 %v2846, %v2846
        %v2879 = vpack.c.b16 %v2847, %v2847
        %v2880 = vpack.c.b16 %v2848, %v2848
        %v2881 = vpack.c.b16 %v2849, %v2849
        %v2882 = vpack.c.b16 %v2850, %v2850
        %v2883 = vpack.c.b16 %v2851, %v2851
        %v2884 = vpack.c.b16 %v2852, %v2852
        %v2885 = vpack.c.b16 %v2853, %v2853
        %v2886 = vpack.c.b16 %v2854, %v2854
        %v2887 = vpack.c.b16 %v2855, %v2855
        %v2888 = vpack.c.b16 %v2856, %v2856
        %v2889 = vpack.c.b16 %v2857, %v2857
        %v2890 = vpack.c.b16 %v2858, %v2858
        %v2891 = vpack.c.b16 %v2859, %v2859
        %vm2924 = vcmask 60416
        %2925 = vst.msk [vmem:[%s207] sm:$0xf] %vm2924, %v2860
        %2926 = vst.msk [vmem:[%s207 + $0x4] sm:$0xf] %vm2924, %v2861
        %2927 = vst.msk [vmem:[%s207 + $0x8] sm:$0xf] %vm2924, %v2862
        %2928 = vst.msk [vmem:[%s207 + $0xc] sm:$0xf] %vm2924, %v2863
        %2929 = vst.msk [vmem:[%s207 + $0x10] sm:$0xf] %vm2924, %v2864
        %2930 = vst.msk [vmem:[%s207 + $0x14] sm:$0xf] %vm2924, %v2865
        %2931 = vst.msk [vmem:[%s207 + $0x18] sm:$0xf] %vm2924, %v2866
        %2932 = vst.msk [vmem:[%s207 + $0x1c] sm:$0xf] %vm2924, %v2867
        %2933 = vst.msk [vmem:[%s207 + $0x20] sm:$0xf] %vm2924, %v2868
        %2934 = vst.msk [vmem:[%s207 + $0x24] sm:$0xf] %vm2924, %v2869
        %2935 = vst.msk [vmem:[%s207 + $0x28] sm:$0xf] %vm2924, %v2870
        %2936 = vst.msk [vmem:[%s207 + $0x2c] sm:$0xf] %vm2924, %v2871
        %2937 = vst.msk [vmem:[%s207 + $0x30] sm:$0xf] %vm2924, %v2872
        %2938 = vst.msk [vmem:[%s207 + $0x34] sm:$0xf] %vm2924, %v2873
        %2939 = vst.msk [vmem:[%s207 + $0x38] sm:$0xf] %vm2924, %v2874
        %2940 = vst.msk [vmem:[%s207 + $0x3c] sm:$0xf] %vm2924, %v2875
        %2941 = vst.msk [vmem:[%s207 + $0x40] sm:$0xf] %vm2924, %v2876
        %2942 = vst.msk [vmem:[%s207 + $0x44] sm:$0xf] %vm2924, %v2877
        %2943 = vst.msk [vmem:[%s207 + $0x48] sm:$0xf] %vm2924, %v2878
        %2944 = vst.msk [vmem:[%s207 + $0x4c] sm:$0xf] %vm2924, %v2879
        %2945 = vst.msk [vmem:[%s207 + $0x50] sm:$0xf] %vm2924, %v2880
        %2946 = vst.msk [vmem:[%s207 + $0x54] sm:$0xf] %vm2924, %v2881
        %2947 = vst.msk [vmem:[%s207 + $0x58] sm:$0xf] %vm2924, %v2882
        %2948 = vst.msk [vmem:[%s207 + $0x5c] sm:$0xf] %vm2924, %v2883
        %2949 = vst.msk [vmem:[%s207 + $0x60] sm:$0xf] %vm2924, %v2884
        %2950 = vst.msk [vmem:[%s207 + $0x64] sm:$0xf] %vm2924, %v2885
        %2951 = vst.msk [vmem:[%s207 + $0x68] sm:$0xf] %vm2924, %v2886
        %2952 = vst.msk [vmem:[%s207 + $0x6c] sm:$0xf] %vm2924, %v2887
        %2953 = vst.msk [vmem:[%s207 + $0x70] sm:$0xf] %vm2924, %v2888
        %2954 = vst.msk [vmem:[%s207 + $0x74] sm:$0xf] %vm2924, %v2889
        %2955 = vst.msk [vmem:[%s207 + $0x78] sm:$0xf] %vm2924, %v2890
        %2956 = vst.msk [vmem:[%s207 + $0x7c] sm:$0xf] %vm2924, %v2891
        %v2957 = vsel %vm2347, %v2670, 0.0
        %v2958 = vsel %vm2347, %v2673, 0.0
        %v2959 = vadd.f32 %v2957, %v2958
        %v2960 = vsel %vm2347, %v2678, 0.0
        %v2961 = vadd.f32 %v2959, %v2960
        %v2962 = vsel %vm2347, %v2681, 0.0
        %v2963 = vadd.f32 %v2961, %v2962
        %v2964 = vsel %vm2347, %v2686, 0.0
        %v2965 = vadd.f32 %v2963, %v2964
        %v2966 = vsel %vm2347, %v2689, 0.0
        %v2967 = vadd.f32 %v2965, %v2966
        %v2968 = vsel %vm2347, %v2694, 0.0
        %v2969 = vadd.f32 %v2967, %v2968
        %v2970 = vsel %vm2347, %v2697, 0.0
        %v2971 = vadd.f32 %v2969, %v2970
        %v2972 = vsel %vm2347, %v2702, 0.0
        %v2973 = vadd.f32 %v2971, %v2972
        %v2974 = vsel %vm2347, %v2705, 0.0
        %v2975 = vadd.f32 %v2973, %v2974
        %v2976 = vsel %vm2347, %v2710, 0.0
        %v2977 = vadd.f32 %v2975, %v2976
        %v2978 = vsel %vm2347, %v2713, 0.0
        %v2979 = vadd.f32 %v2977, %v2978
        %v2980 = vsel %vm2347, %v2718, 0.0
        %v2981 = vadd.f32 %v2979, %v2980
        %v2982 = vsel %vm2347, %v2721, 0.0
        %v2983 = vadd.f32 %v2981, %v2982
        %v2984 = vsel %vm2347, %v2726, 0.0
        %v2985 = vadd.f32 %v2983, %v2984
        %v2986 = vsel %vm2347, %v2729, 0.0
        %v2987 = vadd.f32 %v2985, %v2986
        %v2988 = vsel %vm2347, %v2734, 0.0
        %v2989 = vadd.f32 %v2987, %v2988
        %v2990 = vsel %vm2347, %v2737, 0.0
        %v2991 = vadd.f32 %v2989, %v2990
        %v2992 = vsel %vm2347, %v2742, 0.0
        %v2993 = vadd.f32 %v2991, %v2992
        %v2994 = vsel %vm2347, %v2745, 0.0
        %v2995 = vadd.f32 %v2993, %v2994
        %v2996 = vsel %vm2347, %v2750, 0.0
        %v2997 = vadd.f32 %v2995, %v2996
        %v2998 = vsel %vm2347, %v2753, 0.0
        %v2999 = vadd.f32 %v2997, %v2998
        %v3000 = vsel %vm2347, %v2758, 0.0
        %v3001 = vadd.f32 %v2999, %v3000
        %v3002 = vsel %vm2347, %v2761, 0.0
        %v3003 = vadd.f32 %v3001, %v3002
        %v3004 = vsel %vm2347, %v2766, 0.0
        %v3005 = vadd.f32 %v3003, %v3004
        %v3006 = vsel %vm2347, %v2769, 0.0
        %v3007 = vadd.f32 %v3005, %v3006
        %v3008 = vsel %vm2347, %v2774, 0.0
        %v3009 = vadd.f32 %v3007, %v3008
        %v3010 = vsel %vm2347, %v2777, 0.0
        %v3011 = vadd.f32 %v3009, %v3010
        %v3012 = vsel %vm2347, %v2782, 0.0
        %v3013 = vadd.f32 %v3011, %v3012
        %v3014 = vsel %vm2347, %v2785, 0.0
        %v3015 = vadd.f32 %v3013, %v3014
        %v3016 = vsel %vm2347, %v2790, 0.0
        %v3017 = vadd.f32 %v3015, %v3016
        %v3018 = vsel %vm2347, %v2793, 0.0
        %v3019 = vadd.f32 %v3017, %v3018
        %v3020 = vrot.slane %v3019, 4
        %v3021 = vadd.f32 %v3019, %v3020
        %v3022 = vrot.slane %v3021, 2
        %v3023 = vadd.f32 %v3021, %v3022
        %v3024 = vrot.slane %v3023, 1
        %v3025 = vadd.f32 %v3023, %v3024
        %vm3026 = vcmask 57344
        %3027 = vst.msk [vmem:[%s214] sm:$0x1] %vm3026, %v3025
        %v3028 = vmul.f32 %v2670, %v2670
        %v3029 = vmul.f32 %v2673, %v2673
        %v3030 = vmul.f32 %v2678, %v2678
        %v3031 = vmul.f32 %v2681, %v2681
        %v3032 = vmul.f32 %v2686, %v2686
        %v3033 = vmul.f32 %v2689, %v2689
        %v3034 = vmul.f32 %v2694, %v2694
        %v3035 = vmul.f32 %v2697, %v2697
        %v3036 = vmul.f32 %v2702, %v2702
        %v3037 = vmul.f32 %v2705, %v2705
        %v3038 = vmul.f32 %v2710, %v2710
        %v3039 = vmul.f32 %v2713, %v2713
        %v3040 = vmul.f32 %v2718, %v2718
        %v3041 = vmul.f32 %v2721, %v2721
        %v3042 = vmul.f32 %v2726, %v2726
        %v3043 = vmul.f32 %v2729, %v2729
        %v3044 = vmul.f32 %v2734, %v2734
        %v3045 = vmul.f32 %v2737, %v2737
        %v3046 = vmul.f32 %v2742, %v2742
        %v3047 = vmul.f32 %v2745, %v2745
        %v3048 = vmul.f32 %v2750, %v2750
        %v3049 = vmul.f32 %v2753, %v2753
        %v3050 = vmul.f32 %v2758, %v2758
        %v3051 = vmul.f32 %v2761, %v2761
        %v3052 = vmul.f32 %v2766, %v2766
        %v3053 = vmul.f32 %v2769, %v2769
        %v3054 = vmul.f32 %v2774, %v2774
        %v3055 = vmul.f32 %v2777, %v2777
        %v3056 = vmul.f32 %v2782, %v2782
        %v3057 = vmul.f32 %v2785, %v2785
        %v3058 = vmul.f32 %v2790, %v2790
        %v3059 = vmul.f32 %v2793, %v2793
        %v3060 = vsel %vm2347, %v3028, 0.0
        %v3061 = vsel %vm2347, %v3029, 0.0
        %v3062 = vadd.f32 %v3060, %v3061
        %v3063 = vsel %vm2347, %v3030, 0.0
        %v3064 = vadd.f32 %v3062, %v3063
        %v3065 = vsel %vm2347, %v3031, 0.0
        %v3066 = vadd.f32 %v3064, %v3065
        %v3067 = vsel %vm2347, %v3032, 0.0
        %v3068 = vadd.f32 %v3066, %v3067
        %v3069 = vsel %vm2347, %v3033, 0.0
        %v3070 = vadd.f32 %v3068, %v3069
        %v3071 = vsel %vm2347, %v3034, 0.0
        %v3072 = vadd.f32 %v3070, %v3071
        %v3073 = vsel %vm2347, %v3035, 0.0
        %v3074 = vadd.f32 %v3072, %v3073
        %v3075 = vsel %vm2347, %v3036, 0.0
        %v3076 = vadd.f32 %v3074, %v3075
        %v3077 = vsel %vm2347, %v3037, 0.0
        %v3078 = vadd.f32 %v3076, %v3077
        %v3079 = vsel %vm2347, %v3038, 0.0
        %v3080 = vadd.f32 %v3078, %v3079
        %v3081 = vsel %vm2347, %v3039, 0.0
        %v3082 = vadd.f32 %v3080, %v3081
        %v3083 = vsel %vm2347, %v3040, 0.0
        %v3084 = vadd.f32 %v3082, %v3083
        %v3085 = vsel %vm2347, %v3041, 0.0
        %v3086 = vadd.f32 %v3084, %v3085
        %v3087 = vsel %vm2347, %v3042, 0.0
        %v3088 = vadd.f32 %v3086, %v3087
        %v3089 = vsel %vm2347, %v3043, 0.0
        %v3090 = vadd.f32 %v3088, %v3089
        %v3091 = vsel %vm2347, %v3044, 0.0
        %v3092 = vadd.f32 %v3090, %v3091
        %v3093 = vsel %vm2347, %v3045, 0.0
        %v3094 = vadd.f32 %v3092, %v3093
        %v3095 = vsel %vm2347, %v3046, 0.0
        %v3096 = vadd.f32 %v3094, %v3095
        %v3097 = vsel %vm2347, %v3047, 0.0
        %v3098 = vadd.f32 %v3096, %v3097
        %v3099 = vsel %vm2347, %v3048, 0.0
        %v3100 = vadd.f32 %v3098, %v3099
        %v3101 = vsel %vm2347, %v3049, 0.0
        %v3102 = vadd.f32 %v3100, %v3101
        %v3103 = vsel %vm2347, %v3050, 0.0
        %v3104 = vadd.f32 %v3102, %v3103
        %v3105 = vsel %vm2347, %v3051, 0.0
        %v3106 = vadd.f32 %v3104, %v3105
        %v3107 = vsel %vm2347, %v3052, 0.0
        %v3108 = vadd.f32 %v3106, %v3107
        %v3109 = vsel %vm2347, %v3053, 0.0
        %v3110 = vadd.f32 %v3108, %v3109
        %v3111 = vsel %vm2347, %v3054, 0.0
        %v3112 = vadd.f32 %v3110, %v3111
        %v3113 = vsel %vm2347, %v3055, 0.0
        %v3114 = vadd.f32 %v3112, %v3113
        %v3115 = vsel %vm2347, %v3056, 0.0
        %v3116 = vadd.f32 %v3114, %v3115
        %v3117 = vsel %vm2347, %v3057, 0.0
        %v3118 = vadd.f32 %v3116, %v3117
        %v3119 = vsel %vm2347, %v3058, 0.0
        %v3120 = vadd.f32 %v3118, %v3119
        %v3121 = vsel %vm2347, %v3059, 0.0
        %v3122 = vadd.f32 %v3120, %v3121
        %v3123 = vrot.slane %v3122, 4
        %v3124 = vadd.f32 %v3122, %v3123
        %v3125 = vrot.slane %v3124, 2
        %v3126 = vadd.f32 %v3124, %v3125
        %v3127 = vrot.slane %v3126, 1
        %v3128 = vadd.f32 %v3126, %v3127
        %3129 = vst.msk [vmem:[%s214 + $0x1] sm:$0x1] %vm3026, %v3128
        %s3130 = sand.u32 %s80, 1
        %s3131 = scalar_lea.sflag [#allocation5], %s3130
        %s3132 = sand.u32 %s80, 1
        %s3133 = smul.addr %s3132, 128
        %s3134 = scalar_lea.vmem [#allocation8], %s3133
        %s3135 = sand.u32 %s106, 1
        %s3136 = scalar_lea.sflag [#allocation10], %s3135
        %s3137 = sand.u32 %s106, 1
        %s3138 = smul.addr %s3137, 2
        %s3139 = scalar_lea.vmem [#allocation9], %s3138
        // Predicated region
        $region37: #{tpu_custom_call.1} parent=27 // pred_check
          %p3140 = pneg %p90
        $region38: #{tpu_custom_call.1} parent=27 // pred_check_branch
          %3142 = sbr.rel (%p3140) target = $region40
        $region39: #{tpu_custom_call.1} parent=27 // pred_region
          %s3144 = ssub.s32 2048, 2048
          %3145 = vsyncadd %s3131, %s3144
          %s3146 = smul.addr %s25, 32
          %s3147 = smul.addr %s3146, 64
          %s3148 = scalar_lea.hbm %s2, %s3147
          %s3149 = sshll.u32 %s3134, 4
          %s3150 = int_to_ptr.vmem [resolvable:$true] %s3149
          %3155 = dma.vmem_to_hbm [thread:$0]  %s3150, 2048, %s3148, %s3131, 64, 64, 4
        $region40: #{tpu_custom_call.1} parent=27 // pred_fallthru
          _
        // Predicated region
        $region41: #{tpu_custom_call.1} parent=27 // pred_check
          %p3156 = pneg %p116
        $region42: #{tpu_custom_call.1} parent=27 // pred_check_branch
          %3158 = sbr.rel (%p3156) target = $region44
        $region43: #{tpu_custom_call.1} parent=27 // pred_region
          %s3160 = ssub.s32 32, 32
          %3161 = vsyncadd %s3136, %s3160
          %s3162 = smul.addr %s25, 32
          %s3163 = scalar_lea.hbm %s3, %s3162
          %s3165 = sshll.u32 %s3139, 4
          %s3166 = int_to_ptr.vmem [resolvable:$true] %s3165
          %3168 = dma.vmem_to_hbm [thread:$0]  %s3166, 32, %s3163, %s3136
        $region44: #{tpu_custom_call.1} parent=27 // pred_fallthru
          _
      $region28: #{tpu_custom_call.1} parent=5 // pred_fallthru
        _
      %p3169 = scmp.le.s32.totalorder 2, %s20
      // Predicated region
      $region45: #{tpu_custom_call.1} parent=5 // pred_check
        %p3170 = pneg %p3169
      $region46: #{tpu_custom_call.1} parent=5 // pred_check_branch
        %3172 = sbr.rel (%p3170) target = $region48
      $region47: #{tpu_custom_call.1} parent=5 // pred_region
        %s3173 = ssub.s32 %s20, 2
        // Predicated region
        $region49: #{tpu_custom_call.1} parent=47 // pred_check
          %p3174 = pneg %p96
        $region50: #{tpu_custom_call.1} parent=47 // pred_check_branch
          %3176 = sbr.rel (%p3174) target = $region52
        $region51: #{tpu_custom_call.1} parent=47 // pred_region
          %s3177 = sand.u32 %s81, 1
          %s3178 = scalar_lea.sflag [#allocation5], %s3177
          %s3179 = sand.u32 %s81, 1
          %s3180 = smul.addr %s3179, 128
          %s3181 = scalar_lea.vmem [#allocation8], %s3180
          %3182 = dma.done %s3178, 2048
        $region52: #{tpu_custom_call.1} parent=47 // pred_fallthru
          _
        // Predicated region
        $region53: #{tpu_custom_call.1} parent=47 // pred_check
          %p3183 = pneg %p122
        $region54: #{tpu_custom_call.1} parent=47 // pred_check_branch
          %3185 = sbr.rel (%p3183) target = $region56
        $region55: #{tpu_custom_call.1} parent=47 // pred_region
          %s3186 = sand.u32 %s107, 1
          %s3187 = scalar_lea.sflag [#allocation10], %s3186
          %s3188 = sand.u32 %s107, 1
          %s3189 = smul.addr %s3188, 2
          %s3190 = scalar_lea.vmem [#allocation9], %s3189
          %3191 = dma.done %s3187, 32
        $region56: #{tpu_custom_call.1} parent=47 // pred_fallthru
          _
      $region48: #{tpu_custom_call.1} parent=5 // pred_fallthru
        _
    $region6: #{tpu_custom_call.1} parent=1 // loop_footer
      %s24 = sadd.s32 1, %s20
    $region7: #{tpu_custom_call.1} parent=1 // loop_footer_branch
      %19 = sbr.rel target = $region3
    $region8: #{tpu_custom_call.1} parent=1 // loop_exit
      _
    %3192 = vsyncpa [#allocation4], 1
    %s3193 = scalar_lea.sflag [#allocation4], 1
    %3194 = vsyncpa %s3193, 1
    %3195 = vsyncpa [#allocation7], 1
    %3196 = vsyncpa [#allocation5], 1
    %s3197 = scalar_lea.sflag [#allocation5], 1
    %3198 = vsyncpa %s3197, 1
    %3199 = vsyncpa [#allocation10], 1
    %s3200 = scalar_lea.sflag [#allocation10], 1
    %3201 = vsyncpa %s3200, 1

</llo_original>
